<compile_context>
chip_gen: v7x
topology: tpu7x:2x2x1
jax: 0.10.0
libtpu: 0.0.40
codegen_flags: <defaults>
</compile_context>

<pallas_src>
import functools

import numpy as np
import jax
import jax.numpy as jnp
from jax.experimental import pallas as pl
from jax.experimental.pallas import tpu as pltpu

CUTOFF = 5.0
N_FEATURES = 128       # n_features (module default)
N_BASIS = 8            # n_basis (kept small / sublane-aligned; module default is 20)
N_INTERACTIONS = 3     # n_interactions (module default)
N_NODES = 8
N_GRAPHS = 2


def _swish_ref(x):
    # NewtonNet "swish" == SiLU: x * sigmoid(x)
    return x * (1.0 / (1.0 + jnp.exp(-x)))


def _swish(x):
    # exp and the approximate reciprocal both run on the EUP slot (frees VALU slots).
    return x * pl.reciprocal(1.0 + jnp.exp(-x), approx=True)


# ----------------------------------------------------------------------------------
# Pallas kernel: one InteractionNet layer per grid step; atom/force are VMEM-resident
# accumulator outputs, per-layer weights are prefetched by the BlockSpec pipeline.
# ----------------------------------------------------------------------------------
def newtonnet_kernel(atom_in, force_in, dir_ref, rbf_ref, si_ref,
                     w1_ref, b1_ref, w2_ref, b2_ref, we_ref,
                     wqa_ref, wqb_ref, wu_ref,
                     atom_out, force_out, *, n_nodes, n_features):
    N, F = n_nodes, n_features
    NN = N * N
    layer = pl.program_id(0)

    @pl.when(layer == 0)
    def _():
        atom_out[...] = atom_in[...]
        force_out[...] = force_in[...]

    def mm(a, b):
        # bf16 MXU matmul with f32 accumulation (weights already bf16).
        return jnp.dot(a.astype(jnp.bfloat16), b.astype(jnp.bfloat16),
                       preferred_element_type=jnp.float32)

    def rep_rows(x):   # (N,F) -> (NN,F); row e = i*N + j holds x[i]  (gather on edge source)
        return jnp.broadcast_to(x[:, None, :], (N, N, F)).reshape(NN, F)

    def tile_rows(x):  # (N,F) -> (NN,F); row e = i*N + j holds x[j]  (gather on edge target)
        return jnp.broadcast_to(x[None, :, :], (N, N, F)).reshape(NN, F)

    atom = atom_out[...]                                   # (N, F), carried across layers

    # message_nodepart: Linear -> swish -> Linear                              (N, F)
    h = _swish(mm(atom, w1_ref[0]) + b1_ref[0])
    mnp = mm(h, w2_ref[0]) + b2_ref[0]

    # message_edgepart over all NN dense edges in one matmul                   (NN, F)
    mep = mm(rbf_ref[...], we_ref[0])

    # message[e=(i,j)] = edgepart * nodepart[i] * nodepart[j]  (broadcast gathers, no MXU)
    msg = mep * rep_rows(mnp) * tile_rows(mnp)             # (NN, F)

    # inv_update1 = scatter-add over neighbours j (masked edges are exactly zero)
    si = si_ref[...]                                       # (N, NN) bf16 0/1
    atom = atom + jnp.dot(si, msg.astype(jnp.bfloat16),
                          preferred_element_type=jnp.float32)

    # equivariant message invariant parts: fused (F -> 2F), then block-diag (2F -> 2F)
    hq = _swish(mm(msg, wqa_ref[0]))                       # (NN, 2F)
    q = mm(hq, wqb_ref[0])                                 # (NN, 2F) = [q1 | q2]
    q1 = q[:, :F]
    q2 = q[:, F:]

    # equivariant force update, all 3 cartesian components in one scatter matmul
    force = force_out[...]                                 # (3, N, F), carried across layers
    em = []
    for c in range(3):
        f_j = tile_rows(force[c])                          # force[j] per edge      (NN, F)
        em.append(q1 * dir_ref[c] + q2 * f_j)              # dir_ref[c]: (NN,1) lane-broadcast
    em_cat = jnp.concatenate(em, axis=1)                   # (NN, 3F)
    upd = jnp.dot(si, em_cat.astype(jnp.bfloat16),
                  preferred_element_type=jnp.float32)      # (N, 3F)
    new_force = [force[c] + upd[:, c * F:(c + 1) * F] for c in range(3)]

    # inv_update2 = sum_c f_new[c] * (f_new[c] @ Wu): one (3N, F) matmul
    fstack = jnp.concatenate(new_force, axis=0)            # (3N, F)
    fu = mm(fstack, wu_ref[0])
    atom = atom + (new_force[0] * fu[0:N]
                   + new_force[1] * fu[N:2 * N]
                   + new_force[2] * fu[2 * N:3 * N])

    # full-tile, unmasked stores into the resident accumulator outputs
    atom_out[...] = atom
    for c in range(3):
        force_out[c] = new_force[c]


def run_newtonnet_layers(atom, force, dir3, rbf2d, si, stacked):
    N, F = atom.shape
    NN = N * N
    B = rbf2d.shape[1]
    (w1, b1, w2, b2, we, wqa, wqb, wu) = stacked
    L = w1.shape[0]

    def const_spec(shape):
        zeros = (0,) * len(shape)
        return pl.BlockSpec(shape, lambda l: zeros)

    def layer_spec(shape):
        zeros = (0,) * len(shape)
        return pl.BlockSpec((1,) + shape, lambda l: (l,) + zeros)

    in_specs = [
        const_spec((N, F)),             # atom_in
        const_spec((3, N, F)),          # force_in
        const_spec((3, NN, 1)),         # dir3
        const_spec((NN, B)),            # rbf
        const_spec((N, NN)),            # si
        layer_spec((F, F)),             # w1
        layer_spec((1, F)),             # b1
        layer_spec((F, F)),             # w2
        layer_spec((1, F)),             # b2
        layer_spec((B, F)),             # we
        layer_spec((F, 2 * F)),         # wqa
        layer_spec((2 * F, 2 * F)),     # wqb (block-diag of wq1b / wq2b)
        layer_spec((F, F)),             # wu
    ]
    out_specs = (pl.BlockSpec((N, F), lambda l: (0, 0)),
                 pl.BlockSpec((3, N, F), lambda l: (0, 0, 0)))

    flops_per_layer = 2 * (2 * N * F * F            # node-part linears
                           + NN * B * F             # edge-part linear
                           + N * NN * F             # inv scatter
                           + NN * F * 2 * F         # equiv stage 1 (fused)
                           + NN * 2 * F * 2 * F     # equiv stage 2 (block-diag)
                           + N * NN * 3 * F         # force scatter
                           + 3 * N * F * F)         # equiv_update
    inputs_all = (atom, force, dir3, rbf2d, si) + stacked
    bytes_in = sum(int(np.prod(x.shape)) * x.dtype.itemsize for x in inputs_all)
    bytes_out = (int(np.prod(atom.shape)) + int(np.prod(force.shape))) * 4
    cost = pl.CostEstimate(flops=L * flops_per_layer,
                           transcendentals=L * 2 * (N * F + NN * 2 * F),
                           bytes_accessed=bytes_in + bytes_out)

    kernel = functools.partial(newtonnet_kernel, n_nodes=N, n_features=F)
    return pl.pallas_call(
        kernel,
        out_shape=(jax.ShapeDtypeStruct((N, F), jnp.float32),
                   jax.ShapeDtypeStruct((3, N, F), jnp.float32)),
        grid_spec=pltpu.PrefetchScalarGridSpec(
            num_scalar_prefetch=0,
            grid=(L,),
            in_specs=in_specs,
            out_specs=out_specs),
        compiler_params=pltpu.CompilerParams(
            dimension_semantics=("arbitrary",),
            vmem_limit_bytes=32 * 1024 * 1024),
        cost_estimate=cost,
    )(atom, force, dir3, rbf2d, si, w1, b1, w2, b2, we, wqa, wqb, wu)


# ----------------------------------------------------------------------------------
# Plain-JAX glue: embedding lookup, (identity) displacement, edge geometry / RBF,
# scatter map and per-layer weight stacking (bf16 weights, fused/blk-diag layouts).
# ----------------------------------------------------------------------------------
def embedding_net(z, pos, cell, batch, cutoff, n_basis, n_features, emb_table):
    n_nodes = z.shape[0]
    n_graphs = cell.shape[0]

    atom_node = emb_table[z]                                                # (N, F)
    force_node = jnp.zeros((n_nodes, 3, n_features), jnp.float32)           # (N, 3, F)

    displacement = jnp.broadcast_to(jnp.eye(3, dtype=pos.dtype), (n_graphs, 3, 3))
    sym = (displacement + jnp.swapaxes(displacement, -1, -2)) / 2.0
    pos_d = jnp.einsum('nk,nkl->nl', pos, sym[batch])                       # identity -> pos
    _cell_d = jnp.einsum('gij,gjk->gik', cell, sym)                         # identity -> cell

    diff = pos_d[None, :, :] - pos_d[:, None, :]                            # [i, j] = pos_j - pos_i
    dist = jnp.sqrt(jnp.sum(diff * diff, axis=-1))                          # (N, N)
    same_mol = batch[:, None] == batch[None, :]
    not_self = ~jnp.eye(n_nodes, dtype=bool)
    mask = same_mol & not_self & (dist < cutoff)
    safe = jnp.where(mask, dist, 1.0)

    dir_edge = jnp.where(mask[..., None], diff / safe[..., None], 0.0)      # (N, N, 3)

    freqs = jnp.arange(1, n_basis + 1, dtype=jnp.float32) * jnp.pi / cutoff
    fcut = 0.5 * (jnp.cos(jnp.pi * dist / cutoff) + 1.0)
    rbf = (jnp.sqrt(2.0 / cutoff) * jnp.sin(freqs * dist[..., None])
           / safe[..., None] * fcut[..., None])
    rbf = jnp.where(mask[..., None], rbf, 0.0)                              # (N, N, B)

    return atom_node, force_node, dir_edge, rbf, displacement


def _scatter_map(n_nodes):
    # si[i, e] = 1 iff edge e = (i, j) for some j  (row-major dense edge grid)
    nn = n_nodes * n_nodes
    si = np.zeros((n_nodes, nn), np.float32)
    for i in range(n_nodes):
        si[i, i * n_nodes:(i + 1) * n_nodes] = 1.0
    return jnp.asarray(si, dtype=jnp.bfloat16)


def stack_layer_params(layer_params, n_features):
    F = n_features
    bf = jnp.bfloat16
    w1 = jnp.stack([p[0] for p in layer_params]).astype(bf)                  # (L, F, F)
    b1 = jnp.stack([p[1] for p in layer_params])                             # (L, 1, F) f32
    w2 = jnp.stack([p[2] for p in layer_params]).astype(bf)                  # (L, F, F)
    b2 = jnp.stack([p[3] for p in layer_params])                             # (L, 1, F) f32
    we = jnp.stack([p[4] for p in layer_params]).astype(bf)                  # (L, B, F)
    wqa = jnp.stack([jnp.concatenate([p[5], p[7]], axis=1)                   # (L, F, 2F)
                     for p in layer_params]).astype(bf)

    def blkdiag(a, b):
        z = jnp.zeros((F, F), jnp.float32)
        top = jnp.concatenate([a, z], axis=1)
        bot = jnp.concatenate([z, b], axis=1)
        return jnp.concatenate([top, bot], axis=0)

    wqb = jnp.stack([blkdiag(p[6], p[8]) for p in layer_params]).astype(bf)  # (L, 2F, 2F)
    wu = jnp.stack([p[9] for p in layer_params]).astype(bf)                  # (L, F, F)
    return (w1, b1, w2, b2, we, wqa, wqb, wu)


# ----------------------------------------------------------------------------------
# Full NewtonNet forward (Pallas path) and a pure-JAX reference
# ----------------------------------------------------------------------------------
@jax.jit
def newtonnet_forward(z, pos, cell, batch, emb_table, layer_params):
    n_features = emb_table.shape[1]
    atom, force_ncf, dir_unit, rbf, disp = embedding_net(
        z, pos, cell, batch, CUTOFF, N_BASIS, n_features, emb_table)

    n_nodes = atom.shape[0]
    nn = n_nodes * n_nodes

    force_k = jnp.transpose(force_ncf, (1, 0, 2))                            # (3, N, F)
    dir3 = jnp.transpose(dir_unit, (2, 0, 1)).reshape(3, nn, 1)              # (3, NN, 1) compact
    rbf2d = rbf.reshape(nn, -1)                                              # (NN, B)
    si = _scatter_map(n_nodes)                                               # (N, NN) bf16
    stacked = stack_layer_params(layer_params, n_features)

    atom_k, force_k = run_newtonnet_layers(atom, force_k, dir3, rbf2d, si, stacked)
    force_out = jnp.transpose(force_k, (1, 0, 2))                            # (N, 3, F)
    return atom_k, force_out, dir_unit, rbf, disp


def newtonnet_reference(z, pos, cell, batch, emb_table, layer_params):
    atom, force, dir_unit, rbf, _ = embedding_net(
        z, pos, cell, batch, CUTOFF, N_BASIS, N_FEATURES, emb_table)
    for (w1, b1, w2, b2, we, wq1a, wq1b, wq2a, wq2b, wu) in layer_params:
        mnp = _swish_ref(atom @ w1 + b1) @ w2 + b2
        mep = jnp.einsum('ijb,bf->ijf', rbf, we)
        msg = mep * mnp[:, None, :] * mnp[None, :, :]
        atom = atom + msg.sum(axis=1)
        q1 = jnp.einsum('ijf,fg->ijg', _swish_ref(jnp.einsum('ijf,fg->ijg', msg, wq1a)), wq1b)
        q2 = jnp.einsum('ijf,fg->ijg', _swish_ref(jnp.einsum('ijf,fg->ijg', msg, wq2a)), wq2b)
        em1 = q1[:, :, None, :] * dir_unit[:, :, :, None]
        em2 = q2[:, :, None, :] * force[None, :, :, :]
        force = force + (em1 + em2).sum(axis=1)
        atom = atom + (force * jnp.einsum('ncf,fg->ncg', force, wu)).sum(axis=1)
    return atom, force


# ----------------------------------------------------------------------------------
# Deterministic synthetic parameters (shapes from the module __init__)
# ----------------------------------------------------------------------------------
def init_params(key, n_features, n_basis, n_interactions):
    def lin(k, fan_in, fan_out, scale=0.1):
        return jax.random.normal(k, (fan_in, fan_out), jnp.float32) * scale  # stored as (in, out)

    key, ek = jax.random.split(key)
    emb_table = jax.random.normal(ek, (118 + 1, n_features), jnp.float32) * 0.1
    emb_table = emb_table.at[0].set(0.0)                                     # padding_idx = 0

    layer_params = []
    for _ in range(n_interactions):
        ks = jax.random.split(key, 11)
        key = ks[0]
        w1 = lin(ks[1], n_features, n_features)
        b1 = jax.random.normal(ks[2], (1, n_features), jnp.float32) * 0.05
        w2 = lin(ks[3], n_features, n_features)
        b2 = jax.random.normal(ks[4], (1, n_features), jnp.float32) * 0.05
        we = lin(ks[5], n_basis, n_features)                                 # bias-free
        wq1a = lin(ks[6], n_features, n_features)
        wq1b = lin(ks[7], n_features, n_features)
        wq2a = lin(ks[8], n_features, n_features)
        wq2b = lin(ks[9], n_features, n_features)
        wu = lin(ks[10], n_features, n_features)
        layer_params.append((w1, b1, w2, b2, we, wq1a, wq1b, wq2a, wq2b, wu))
    return emb_table, layer_params


if __name__ == "__main__":
    root = jax.random.PRNGKey(0)
    kz, kp, kw = jax.random.split(root, 3)

    z = jax.random.randint(kz, (N_NODES,), 1, 11, dtype=jnp.int32)
    pos = jax.random.normal(kp, (N_NODES, 3), jnp.float32) * 1.5
    cell = jnp.broadcast_to(jnp.eye(3, dtype=jnp.float32) * 10.0, (N_GRAPHS, 3, 3))
    batch = jnp.array([0, 0, 0, 0, 1, 1, 1, 1], dtype=jnp.int32)

    emb_table, layer_params = init_params(kw, N_FEATURES, N_BASIS, N_INTERACTIONS)

    atom_node, force_node, dir_edge, dist_edge, displacement = newtonnet_forward(
        z, pos, cell, batch, emb_table, layer_params)
    atom_node = jax.block_until_ready(atom_node)
    force_node = jax.block_until_ready(force_node)

    atom_ref, force_ref = newtonnet_reference(z, pos, cell, batch, emb_table, layer_params)
    atom_ref = jax.block_until_ready(atom_ref)
    force_ref = jax.block_until_ready(force_ref)

    # bf16 weights + approx reciprocal in swish -> slightly looser tolerances than pure-f32.
    if not np.allclose(np.asarray(atom_node), np.asarray(atom_ref), atol=3e-3, rtol=3e-2):
        raise AssertionError("atom_node mismatch vs JAX reference")
    if not np.allclose(np.asarray(force_node), np.asarray(force_ref), atol=3e-3, rtol=3e-2):
        raise AssertionError("force_node mismatch vs JAX reference")

    print("KERNEL_OK")
</pallas_src>

<mosaic_0001>
module attributes {stable_mosaic.version = 11 : i64} {
  func.func @newtonnet_kernel(%arg0: i32, %arg1: memref<8x128xf32, #tpu.memory_space<vmem>>, %arg2: memref<3x8x128xf32, #tpu.memory_space<vmem>>, %arg3: memref<3x64x1xf32, #tpu.memory_space<vmem>>, %arg4: memref<64x8xf32, #tpu.memory_space<vmem>>, %arg5: memref<8x64xbf16, #tpu.memory_space<vmem>>, %arg6: memref<1x128x128xbf16, #tpu.memory_space<vmem>>, %arg7: memref<1x1x128xf32, #tpu.memory_space<vmem>>, %arg8: memref<1x128x128xbf16, #tpu.memory_space<vmem>>, %arg9: memref<1x1x128xf32, #tpu.memory_space<vmem>>, %arg10: memref<1x8x128xbf16, #tpu.memory_space<vmem>>, %arg11: memref<1x128x256xbf16, #tpu.memory_space<vmem>>, %arg12: memref<1x256x256xbf16, #tpu.memory_space<vmem>>, %arg13: memref<1x128x128xbf16, #tpu.memory_space<vmem>>, %arg14: memref<8x128xf32, #tpu.memory_space<vmem>>, %arg15: memref<3x8x128xf32, #tpu.memory_space<vmem>>) attributes {dimension_semantics = [#tpu.dimension_semantics<arbitrary>], iteration_bounds = array<i64: 3>, scalar_prefetch = 0 : i64, scratch_operands = 0 : i64, tpu.core_type = #tpu.core_type<tc>, window_params = [{pipeline_mode = #tpu.pipeline_mode<synchronous>, transform_indices = @transform_0, window_bounds = array<i64: 8, 128>}, {pipeline_mode = #tpu.pipeline_mode<synchronous>, transform_indices = @transform_1, window_bounds = array<i64: 3, 8, 128>}, {pipeline_mode = #tpu.pipeline_mode<synchronous>, transform_indices = @transform_2, window_bounds = array<i64: 3, 64, 1>}, {pipeline_mode = #tpu.pipeline_mode<synchronous>, transform_indices = @transform_3, window_bounds = array<i64: 64, 8>}, {pipeline_mode = #tpu.pipeline_mode<synchronous>, transform_indices = @transform_4, window_bounds = array<i64: 8, 64>}, {transform_indices = @transform_5, window_bounds = array<i64: 1, 128, 128>}, {transform_indices = @transform_6, window_bounds = array<i64: 1, 1, 128>}, {transform_indices = @transform_7, window_bounds = array<i64: 1, 128, 128>}, {transform_indices = @transform_8, window_bounds = array<i64: 1, 1, 128>}, {transform_indices = @transform_9, window_bounds = array<i64: 1, 8, 128>}, {transform_indices = @transform_10, window_bounds = array<i64: 1, 128, 256>}, {transform_indices = @transform_11, window_bounds = array<i64: 1, 256, 256>}, {transform_indices = @transform_12, window_bounds = array<i64: 1, 128, 128>}, {pipeline_mode = #tpu.pipeline_mode<synchronous>, transform_indices = @transform_13, window_bounds = array<i64: 8, 128>}, {pipeline_mode = #tpu.pipeline_mode<synchronous>, transform_indices = @transform_14, window_bounds = array<i64: 3, 8, 128>}]} {
    %c0_i32 = arith.constant 0 : i32
    %0 = arith.cmpi eq, %arg0, %c0_i32 : i32
    %1 = arith.extui %0 : i1 to i32
    %c0_i32_0 = arith.constant 0 : i32
    %2 = arith.cmpi ne, %1, %c0_i32_0 : i32
    scf.if %2 {
      %c0_62 = arith.constant 0 : index
      %c0_63 = arith.constant 0 : index
      %139 = vector.load %arg1[%c0_62, %c0_63] : memref<8x128xf32, #tpu.memory_space<vmem>>, vector<8x128xf32>
      %c0_64 = arith.constant 0 : index
      %c0_65 = arith.constant 0 : index
      %140 = vector.load %arg14[%c0_64, %c0_65] : memref<8x128xf32, #tpu.memory_space<vmem>>, vector<8x128xf32>
      tpu.vector_store %arg14[%c0_64, %c0_65], %139 {strides = array<i32>} : memref<8x128xf32, #tpu.memory_space<vmem>>, vector<8x128xf32>,
      %c0_66 = arith.constant 0 : index
      %c0_67 = arith.constant 0 : index
      %c0_68 = arith.constant 0 : index
      %141 = vector.load %arg2[%c0_66, %c0_67, %c0_68] : memref<3x8x128xf32, #tpu.memory_space<vmem>>, vector<3x8x128xf32>
      %c0_69 = arith.constant 0 : index
      %c0_70 = arith.constant 0 : index
      %c0_71 = arith.constant 0 : index
      %142 = vector.load %arg15[%c0_69, %c0_70, %c0_71] : memref<3x8x128xf32, #tpu.memory_space<vmem>>, vector<3x8x128xf32>
      tpu.vector_store %arg15[%c0_69, %c0_70, %c0_71], %141 {strides = array<i32>} : memref<3x8x128xf32, #tpu.memory_space<vmem>>, vector<3x8x128xf32>,
    } else {
    }
    %c0 = arith.constant 0 : index
    %c0_1 = arith.constant 0 : index
    %3 = vector.load %arg14[%c0, %c0_1] : memref<8x128xf32, #tpu.memory_space<vmem>>, vector<8x128xf32>
    %c0_2 = arith.constant 0 : index
    %c0_3 = arith.constant 0 : index
    %c0_4 = arith.constant 0 : index
    %4 = vector.load %arg6[%c0_2, %c0_3, %c0_4] : memref<1x128x128xbf16, #tpu.memory_space<vmem>>, vector<1x128x128xbf16>
    %5 = vector.shape_cast %4 : vector<1x128x128xbf16> to vector<128x128xbf16>
    %6 = arith.truncf %3 : vector<8x128xf32> to vector<8x128xbf16>
    %cst = arith.constant dense<0.000000e+00> : vector<8x128xf32>
    %7 = tpu.matmul %6, %5, %cst {dimension_numbers = #tpu.dot_dimension_numbers<[1], [0], [0], [1], [0, 0, 1, 1], [], []>} : vector<8x128xbf16>, vector<128x128xbf16>, vector<8x128xf32> -> vector<8x128xf32>
    %c0_5 = arith.constant 0 : index
    %c0_6 = arith.constant 0 : index
    %c0_7 = arith.constant 0 : index
    %8 = vector.load %arg7[%c0_5, %c0_6, %c0_7] : memref<1x1x128xf32, #tpu.memory_space<vmem>>, vector<1x1x128xf32>
    %9 = vector.shape_cast %8 : vector<1x1x128xf32> to vector<1x128xf32>
    %10 = vector.broadcast %9 : vector<1x128xf32> to vector<8x128xf32>
    %11 = arith.addf %7, %10 : vector<8x128xf32>
    %cst_8 = arith.constant 0.000000e+00 : f32
    %12 = vector.broadcast %cst_8 : f32 to vector<8x128xf32>
    %13 = arith.subf %12, %11 : vector<8x128xf32>
    %14 = math.exp %13 : vector<8x128xf32>
    %cst_9 = arith.constant 1.000000e+00 : f32
    %15 = vector.broadcast %cst_9 : f32 to vector<8x128xf32>
    %16 = arith.addf %15, %14 : vector<8x128xf32>
    %17 = tpu.reciprocal %16 {approx = true} : vector<8x128xf32> -> vector<8x128xf32>
    %18 = arith.mulf %11, %17 : vector<8x128xf32>
    %c0_10 = arith.constant 0 : index
    %c0_11 = arith.constant 0 : index
    %c0_12 = arith.constant 0 : index
    %19 = vector.load %arg8[%c0_10, %c0_11, %c0_12] : memref<1x128x128xbf16, #tpu.memory_space<vmem>>, vector<1x128x128xbf16>
    %20 = vector.shape_cast %19 : vector<1x128x128xbf16> to vector<128x128xbf16>
    %21 = arith.truncf %18 : vector<8x128xf32> to vector<8x128xbf16>
    %cst_13 = arith.constant dense<0.000000e+00> : vector<8x128xf32>
    %22 = tpu.matmul %21, %20, %cst_13 {dimension_numbers = #tpu.dot_dimension_numbers<[1], [0], [0], [1], [0, 0, 1, 1], [], []>} : vector<8x128xbf16>, vector<128x128xbf16>, vector<8x128xf32> -> vector<8x128xf32>
    %c0_14 = arith.constant 0 : index
    %c0_15 = arith.constant 0 : index
    %c0_16 = arith.constant 0 : index
    %23 = vector.load %arg9[%c0_14, %c0_15, %c0_16] : memref<1x1x128xf32, #tpu.memory_space<vmem>>, vector<1x1x128xf32>
    %24 = vector.shape_cast %23 : vector<1x1x128xf32> to vector<1x128xf32>
    %25 = vector.broadcast %24 : vector<1x128xf32> to vector<8x128xf32>
    %26 = arith.addf %22, %25 : vector<8x128xf32>
    %c0_17 = arith.constant 0 : index
    %c0_18 = arith.constant 0 : index
    %27 = vector.load %arg4[%c0_17, %c0_18] : memref<64x8xf32, #tpu.memory_space<vmem>>, vector<64x8xf32>
    %c0_19 = arith.constant 0 : index
    %c0_20 = arith.constant 0 : index
    %c0_21 = arith.constant 0 : index
    %28 = vector.load %arg10[%c0_19, %c0_20, %c0_21] : memref<1x8x128xbf16, #tpu.memory_space<vmem>>, vector<1x8x128xbf16>
    %29 = vector.shape_cast %28 : vector<1x8x128xbf16> to vector<8x128xbf16>
    %30 = arith.truncf %27 : vector<64x8xf32> to vector<64x8xbf16>
    %cst_22 = arith.constant dense<0.000000e+00> : vector<64x128xf32>
    %31 = tpu.matmul %30, %29, %cst_22 {dimension_numbers = #tpu.dot_dimension_numbers<[1], [0], [0], [1], [0, 0, 1, 1], [], []>} : vector<64x8xbf16>, vector<8x128xbf16>, vector<64x128xf32> -> vector<64x128xf32>
    %32 = vector.shape_cast %26 : vector<8x128xf32> to vector<8x1x128xf32>
    %33 = vector.shape_cast %32 : vector<8x1x128xf32> to vector<8x1x128xf32>
    %34 = vector.broadcast %33 : vector<8x1x128xf32> to vector<8x8x128xf32>
    %35 = vector.shape_cast %34 : vector<8x8x128xf32> to vector<64x128xf32>
    %36 = arith.mulf %31, %35 : vector<64x128xf32>
    %37 = vector.shape_cast %26 : vector<8x128xf32> to vector<1x8x128xf32>
    %38 = vector.shape_cast %37 : vector<1x8x128xf32> to vector<1x8x128xf32>
    %39 = vector.broadcast %38 : vector<1x8x128xf32> to vector<8x8x128xf32>
    %40 = vector.shape_cast %39 : vector<8x8x128xf32> to vector<64x128xf32>
    %41 = arith.mulf %36, %40 : vector<64x128xf32>
    %c0_23 = arith.constant 0 : index
    %c0_24 = arith.constant 0 : index
    %42 = vector.load %arg5[%c0_23, %c0_24] : memref<8x64xbf16, #tpu.memory_space<vmem>>, vector<8x64xbf16>
    %43 = arith.truncf %41 : vector<64x128xf32> to vector<64x128xbf16>
    %cst_25 = arith.constant dense<0.000000e+00> : vector<8x128xf32>
    %44 = tpu.matmul %42, %43, %cst_25 {dimension_numbers = #tpu.dot_dimension_numbers<[1], [0], [0], [1], [0, 0, 1, 1], [], []>} : vector<8x64xbf16>, vector<64x128xbf16>, vector<8x128xf32> -> vector<8x128xf32>
    %45 = arith.addf %3, %44 : vector<8x128xf32>
    %c0_26 = arith.constant 0 : index
    %c0_27 = arith.constant 0 : index
    %c0_28 = arith.constant 0 : index
    %46 = vector.load %arg11[%c0_26, %c0_27, %c0_28] : memref<1x128x256xbf16, #tpu.memory_space<vmem>>, vector<1x128x256xbf16>
    %47 = vector.shape_cast %46 : vector<1x128x256xbf16> to vector<128x256xbf16>
    %48 = arith.truncf %41 : vector<64x128xf32> to vector<64x128xbf16>
    %cst_29 = arith.constant dense<0.000000e+00> : vector<64x256xf32>
    %49 = tpu.matmul %48, %47, %cst_29 {dimension_numbers = #tpu.dot_dimension_numbers<[1], [0], [0], [1], [0, 0, 1, 1], [], []>} : vector<64x128xbf16>, vector<128x256xbf16>, vector<64x256xf32> -> vector<64x256xf32>
    %cst_30 = arith.constant 0.000000e+00 : f32
    %50 = vector.broadcast %cst_30 : f32 to vector<64x256xf32>
    %51 = arith.subf %50, %49 : vector<64x256xf32>
    %52 = math.exp %51 : vector<64x256xf32>
    %cst_31 = arith.constant 1.000000e+00 : f32
    %53 = vector.broadcast %cst_31 : f32 to vector<64x256xf32>
    %54 = arith.addf %53, %52 : vector<64x256xf32>
    %55 = tpu.reciprocal %54 {approx = true} : vector<64x256xf32> -> vector<64x256xf32>
    %56 = arith.mulf %49, %55 : vector<64x256xf32>
    %c0_32 = arith.constant 0 : index
    %c0_33 = arith.constant 0 : index
    %c0_34 = arith.constant 0 : index
    %57 = vector.load %arg12[%c0_32, %c0_33, %c0_34] : memref<1x256x256xbf16, #tpu.memory_space<vmem>>, vector<1x256x256xbf16>
    %58 = vector.shape_cast %57 : vector<1x256x256xbf16> to vector<256x256xbf16>
    %59 = arith.truncf %56 : vector<64x256xf32> to vector<64x256xbf16>
    %cst_35 = arith.constant dense<0.000000e+00> : vector<64x256xf32>
    %60 = tpu.matmul %59, %58, %cst_35 {dimension_numbers = #tpu.dot_dimension_numbers<[1], [0], [0], [1], [0, 0, 1, 1], [], []>} : vector<64x256xbf16>, vector<256x256xbf16>, vector<64x256xf32> -> vector<64x256xf32>
    %61 = vector.extract_strided_slice %60 {offsets = [0, 0], sizes = [64, 128], strides = [1, 1]} : vector<64x256xf32> to vector<64x128xf32>
    %62 = vector.extract_strided_slice %60 {offsets = [0, 128], sizes = [64, 128], strides = [1, 1]} : vector<64x256xf32> to vector<64x128xf32>
    %c0_36 = arith.constant 0 : index
    %c0_37 = arith.constant 0 : index
    %c0_38 = arith.constant 0 : index
    %63 = vector.load %arg15[%c0_36, %c0_37, %c0_38] : memref<3x8x128xf32, #tpu.memory_space<vmem>>, vector<3x8x128xf32>
    %64 = vector.extract_strided_slice %63 {offsets = [0, 0, 0], sizes = [1, 8, 128], strides = [1, 1, 1]} : vector<3x8x128xf32> to vector<1x8x128xf32>
    %65 = vector.shape_cast %64 : vector<1x8x128xf32> to vector<8x128xf32>
    %66 = vector.shape_cast %65 : vector<8x128xf32> to vector<1x8x128xf32>
    %67 = vector.shape_cast %66 : vector<1x8x128xf32> to vector<1x8x128xf32>
    %68 = vector.broadcast %67 : vector<1x8x128xf32> to vector<8x8x128xf32>
    %69 = vector.shape_cast %68 : vector<8x8x128xf32> to vector<64x128xf32>
    %c0_39 = arith.constant 0 : index
    %c0_40 = arith.constant 0 : index
    %c0_41 = arith.constant 0 : index
    %70 = vector.load %arg3[%c0_39, %c0_40, %c0_41] : memref<3x64x1xf32, #tpu.memory_space<vmem>>, vector<1x64x1xf32>
    %71 = vector.shape_cast %70 : vector<1x64x1xf32> to vector<64x1xf32>
    %72 = vector.broadcast %71 : vector<64x1xf32> to vector<64x128xf32>
    %73 = arith.mulf %61, %72 : vector<64x128xf32>
    %74 = arith.mulf %62, %69 : vector<64x128xf32>
    %75 = arith.addf %73, %74 : vector<64x128xf32>
    %76 = vector.extract_strided_slice %63 {offsets = [1, 0, 0], sizes = [1, 8, 128], strides = [1, 1, 1]} : vector<3x8x128xf32> to vector<1x8x128xf32>
    %77 = vector.shape_cast %76 : vector<1x8x128xf32> to vector<8x128xf32>
    %78 = vector.shape_cast %77 : vector<8x128xf32> to vector<1x8x128xf32>
    %79 = vector.shape_cast %78 : vector<1x8x128xf32> to vector<1x8x128xf32>
    %80 = vector.broadcast %79 : vector<1x8x128xf32> to vector<8x8x128xf32>
    %81 = vector.shape_cast %80 : vector<8x8x128xf32> to vector<64x128xf32>
    %c1 = arith.constant 1 : index
    %c0_42 = arith.constant 0 : index
    %c0_43 = arith.constant 0 : index
    %82 = vector.load %arg3[%c1, %c0_42, %c0_43] : memref<3x64x1xf32, #tpu.memory_space<vmem>>, vector<1x64x1xf32>
    %83 = vector.shape_cast %82 : vector<1x64x1xf32> to vector<64x1xf32>
    %84 = vector.broadcast %83 : vector<64x1xf32> to vector<64x128xf32>
    %85 = arith.mulf %61, %84 : vector<64x128xf32>
    %86 = arith.mulf %62, %81 : vector<64x128xf32>
    %87 = arith.addf %85, %86 : vector<64x128xf32>
    %88 = vector.extract_strided_slice %63 {offsets = [2, 0, 0], sizes = [1, 8, 128], strides = [1, 1, 1]} : vector<3x8x128xf32> to vector<1x8x128xf32>
    %89 = vector.shape_cast %88 : vector<1x8x128xf32> to vector<8x128xf32>
    %90 = vector.shape_cast %89 : vector<8x128xf32> to vector<1x8x128xf32>
    %91 = vector.shape_cast %90 : vector<1x8x128xf32> to vector<1x8x128xf32>
    %92 = vector.broadcast %91 : vector<1x8x128xf32> to vector<8x8x128xf32>
    %93 = vector.shape_cast %92 : vector<8x8x128xf32> to vector<64x128xf32>
    %c2 = arith.constant 2 : index
    %c0_44 = arith.constant 0 : index
    %c0_45 = arith.constant 0 : index
    %94 = vector.load %arg3[%c2, %c0_44, %c0_45] : memref<3x64x1xf32, #tpu.memory_space<vmem>>, vector<1x64x1xf32>
    %95 = vector.shape_cast %94 : vector<1x64x1xf32> to vector<64x1xf32>
    %96 = vector.broadcast %95 : vector<64x1xf32> to vector<64x128xf32>
    %97 = arith.mulf %61, %96 : vector<64x128xf32>
    %98 = arith.mulf %62, %93 : vector<64x128xf32>
    %99 = arith.addf %97, %98 : vector<64x128xf32>
    %100 = tpu.concatenate %75, %87, %99 in 1 : vector<64x128xf32>, vector<64x128xf32>, vector<64x128xf32> -> vector<64x384xf32>
    %101 = arith.truncf %100 : vector<64x384xf32> to vector<64x384xbf16>
    %cst_46 = arith.constant dense<0.000000e+00> : vector<8x384xf32>
    %102 = tpu.matmul %42, %101, %cst_46 {dimension_numbers = #tpu.dot_dimension_numbers<[1], [0], [0], [1], [0, 0, 1, 1], [], []>} : vector<8x64xbf16>, vector<64x384xbf16>, vector<8x384xf32> -> vector<8x384xf32>
    %103 = vector.extract_strided_slice %63 {offsets = [0, 0, 0], sizes = [1, 8, 128], strides = [1, 1, 1]} : vector<3x8x128xf32> to vector<1x8x128xf32>
    %104 = vector.shape_cast %103 : vector<1x8x128xf32> to vector<8x128xf32>
    %105 = vector.extract_strided_slice %102 {offsets = [0, 0], sizes = [8, 128], strides = [1, 1]} : vector<8x384xf32> to vector<8x128xf32>
    %106 = arith.addf %104, %105 : vector<8x128xf32>
    %107 = vector.extract_strided_slice %63 {offsets = [1, 0, 0], sizes = [1, 8, 128], strides = [1, 1, 1]} : vector<3x8x128xf32> to vector<1x8x128xf32>
    %108 = vector.shape_cast %107 : vector<1x8x128xf32> to vector<8x128xf32>
    %109 = vector.extract_strided_slice %102 {offsets = [0, 128], sizes = [8, 128], strides = [1, 1]} : vector<8x384xf32> to vector<8x128xf32>
    %110 = arith.addf %108, %109 : vector<8x128xf32>
    %111 = vector.extract_strided_slice %63 {offsets = [2, 0, 0], sizes = [1, 8, 128], strides = [1, 1, 1]} : vector<3x8x128xf32> to vector<1x8x128xf32>
    %112 = vector.shape_cast %111 : vector<1x8x128xf32> to vector<8x128xf32>
    %113 = vector.extract_strided_slice %102 {offsets = [0, 256], sizes = [8, 128], strides = [1, 1]} : vector<8x384xf32> to vector<8x128xf32>
    %114 = arith.addf %112, %113 : vector<8x128xf32>
    %115 = tpu.concatenate %106, %110, %114 in 0 : vector<8x128xf32>, vector<8x128xf32>, vector<8x128xf32> -> vector<24x128xf32>
    %c0_47 = arith.constant 0 : index
    %c0_48 = arith.constant 0 : index
    %c0_49 = arith.constant 0 : index
    %116 = vector.load %arg13[%c0_47, %c0_48, %c0_49] : memref<1x128x128xbf16, #tpu.memory_space<vmem>>, vector<1x128x128xbf16>
    %117 = vector.shape_cast %116 : vector<1x128x128xbf16> to vector<128x128xbf16>
    %118 = arith.truncf %115 : vector<24x128xf32> to vector<24x128xbf16>
    %cst_50 = arith.constant dense<0.000000e+00> : vector<24x128xf32>
    %119 = tpu.matmul %118, %117, %cst_50 {dimension_numbers = #tpu.dot_dimension_numbers<[1], [0], [0], [1], [0, 0, 1, 1], [], []>} : vector<24x128xbf16>, vector<128x128xbf16>, vector<24x128xf32> -> vector<24x128xf32>
    %120 = vector.extract_strided_slice %119 {offsets = [0, 0], sizes = [8, 128], strides = [1, 1]} : vector<24x128xf32> to vector<8x128xf32>
    %121 = arith.mulf %106, %120 : vector<8x128xf32>
    %122 = vector.extract_strided_slice %119 {offsets = [8, 0], sizes = [8, 128], strides = [1, 1]} : vector<24x128xf32> to vector<8x128xf32>
    %123 = arith.mulf %110, %122 : vector<8x128xf32>
    %124 = arith.addf %121, %123 : vector<8x128xf32>
    %125 = vector.extract_strided_slice %119 {offsets = [16, 0], sizes = [8, 128], strides = [1, 1]} : vector<24x128xf32> to vector<8x128xf32>
    %126 = arith.mulf %114, %125 : vector<8x128xf32>
    %127 = arith.addf %124, %126 : vector<8x128xf32>
    %128 = arith.addf %45, %127 : vector<8x128xf32>
    %c0_51 = arith.constant 0 : index
    %c0_52 = arith.constant 0 : index
    %129 = vector.load %arg14[%c0_51, %c0_52] : memref<8x128xf32, #tpu.memory_space<vmem>>, vector<8x128xf32>
    tpu.vector_store %arg14[%c0_51, %c0_52], %128 {strides = array<i32>} : memref<8x128xf32, #tpu.memory_space<vmem>>, vector<8x128xf32>,
    %c0_53 = arith.constant 0 : index
    %c0_54 = arith.constant 0 : index
    %c0_55 = arith.constant 0 : index
    %130 = vector.load %arg15[%c0_53, %c0_54, %c0_55] : memref<3x8x128xf32, #tpu.memory_space<vmem>>, vector<1x8x128xf32>
    %131 = vector.shape_cast %130 : vector<1x8x128xf32> to vector<8x128xf32>
    %132 = vector.shape_cast %106 : vector<8x128xf32> to vector<1x8x128xf32>
    tpu.vector_store %arg15[%c0_53, %c0_54, %c0_55], %132 {strides = array<i32>} : memref<3x8x128xf32, #tpu.memory_space<vmem>>, vector<1x8x128xf32>,
    %c1_56 = arith.constant 1 : index
    %c0_57 = arith.constant 0 : index
    %c0_58 = arith.constant 0 : index
    %133 = vector.load %arg15[%c1_56, %c0_57, %c0_58] : memref<3x8x128xf32, #tpu.memory_space<vmem>>, vector<1x8x128xf32>
    %134 = vector.shape_cast %133 : vector<1x8x128xf32> to vector<8x128xf32>
    %135 = vector.shape_cast %110 : vector<8x128xf32> to vector<1x8x128xf32>
    tpu.vector_store %arg15[%c1_56, %c0_57, %c0_58], %135 {strides = array<i32>} : memref<3x8x128xf32, #tpu.memory_space<vmem>>, vector<1x8x128xf32>,
    %c2_59 = arith.constant 2 : index
    %c0_60 = arith.constant 0 : index
    %c0_61 = arith.constant 0 : index
    %136 = vector.load %arg15[%c2_59, %c0_60, %c0_61] : memref<3x8x128xf32, #tpu.memory_space<vmem>>, vector<1x8x128xf32>
    %137 = vector.shape_cast %136 : vector<1x8x128xf32> to vector<8x128xf32>
    %138 = vector.shape_cast %114 : vector<8x128xf32> to vector<1x8x128xf32>
    tpu.vector_store %arg15[%c2_59, %c0_60, %c0_61], %138 {strides = array<i32>} : memref<3x8x128xf32, #tpu.memory_space<vmem>>, vector<1x8x128xf32>,
    return
  }
  func.func @transform_0(%arg0: i32) -> (i32, i32) {
    %c0_i32 = arith.constant 0 : i32
    %c0_i32_0 = arith.constant 0 : i32
    %c0_i32_1 = arith.constant 0 : i32
    return %c0_i32, %c0_i32_0 : i32, i32
  }
  func.func @transform_1(%arg0: i32) -> (i32, i32, i32) {
    %c0_i32 = arith.constant 0 : i32
    %c0_i32_0 = arith.constant 0 : i32
    %c0_i32_1 = arith.constant 0 : i32
    %c0_i32_2 = arith.constant 0 : i32
    return %c0_i32, %c0_i32_0, %c0_i32_1 : i32, i32, i32
  }
  func.func @transform_2(%arg0: i32) -> (i32, i32, i32) {
    %c0_i32 = arith.constant 0 : i32
    %c0_i32_0 = arith.constant 0 : i32
    %c0_i32_1 = arith.constant 0 : i32
    %c0_i32_2 = arith.constant 0 : i32
    return %c0_i32, %c0_i32_0, %c0_i32_1 : i32, i32, i32
  }
  func.func @transform_3(%arg0: i32) -> (i32, i32) {
    %c0_i32 = arith.constant 0 : i32
    %c0_i32_0 = arith.constant 0 : i32
    %c0_i32_1 = arith.constant 0 : i32
    return %c0_i32, %c0_i32_0 : i32, i32
  }
  func.func @transform_4(%arg0: i32) -> (i32, i32) {
    %c0_i32 = arith.constant 0 : i32
    %c0_i32_0 = arith.constant 0 : i32
    %c0_i32_1 = arith.constant 0 : i32
    return %c0_i32, %c0_i32_0 : i32, i32
  }
  func.func @transform_5(%arg0: i32) -> (i32, i32, i32) {
    %c0_i32 = arith.constant 0 : i32
    %c0_i32_0 = arith.constant 0 : i32
    %c0_i32_1 = arith.constant 0 : i32
    return %arg0, %c0_i32, %c0_i32_0 : i32, i32, i32
  }
  func.func @transform_6(%arg0: i32) -> (i32, i32, i32) {
    %c0_i32 = arith.constant 0 : i32
    %c0_i32_0 = arith.constant 0 : i32
    %c0_i32_1 = arith.constant 0 : i32
    return %arg0, %c0_i32, %c0_i32_0 : i32, i32, i32
  }
  func.func @transform_7(%arg0: i32) -> (i32, i32, i32) {
    %c0_i32 = arith.constant 0 : i32
    %c0_i32_0 = arith.constant 0 : i32
    %c0_i32_1 = arith.constant 0 : i32
    return %arg0, %c0_i32, %c0_i32_0 : i32, i32, i32
  }
  func.func @transform_8(%arg0: i32) -> (i32, i32, i32) {
    %c0_i32 = arith.constant 0 : i32
    %c0_i32_0 = arith.constant 0 : i32
    %c0_i32_1 = arith.constant 0 : i32
    return %arg0, %c0_i32, %c0_i32_0 : i32, i32, i32
  }
  func.func @transform_9(%arg0: i32) -> (i32, i32, i32) {
    %c0_i32 = arith.constant 0 : i32
    %c0_i32_0 = arith.constant 0 : i32
    %c0_i32_1 = arith.constant 0 : i32
    return %arg0, %c0_i32, %c0_i32_0 : i32, i32, i32
  }
  func.func @transform_10(%arg0: i32) -> (i32, i32, i32) {
    %c0_i32 = arith.constant 0 : i32
    %c0_i32_0 = arith.constant 0 : i32
    %c0_i32_1 = arith.constant 0 : i32
    return %arg0, %c0_i32, %c0_i32_0 : i32, i32, i32
  }
  func.func @transform_11(%arg0: i32) -> (i32, i32, i32) {
    %c0_i32 = arith.constant 0 : i32
    %c0_i32_0 = arith.constant 0 : i32
    %c0_i32_1 = arith.constant 0 : i32
    return %arg0, %c0_i32, %c0_i32_0 : i32, i32, i32
  }
  func.func @transform_12(%arg0: i32) -> (i32, i32, i32) {
    %c0_i32 = arith.constant 0 : i32
    %c0_i32_0 = arith.constant 0 : i32
    %c0_i32_1 = arith.constant 0 : i32
    return %arg0, %c0_i32, %c0_i32_0 : i32, i32, i32
  }
  func.func @transform_13(%arg0: i32) -> (i32, i32) {
    %c0_i32 = arith.constant 0 : i32
    %c0_i32_0 = arith.constant 0 : i32
    %c0_i32_1 = arith.constant 0 : i32
    return %c0_i32, %c0_i32_0 : i32, i32
  }
  func.func @transform_14(%arg0: i32) -> (i32, i32, i32) {
    %c0_i32 = arith.constant 0 : i32
    %c0_i32_0 = arith.constant 0 : i32
    %c0_i32_1 = arith.constant 0 : i32
    %c0_i32_2 = arith.constant 0 : i32
    return %c0_i32, %c0_i32_0, %c0_i32_1 : i32, i32, i32
  }
}

</mosaic_0001>

<llo_original>
// kernel: newtonnet_forward.1
$region0: #{newtonnet_forward.1}
  #allocation0 [shape = 'u32[]', space=smem, size = 0x4, offset = 0x4, fixed_abs, tag = 'smem constant byte address 0x4 - core index']
  #allocation1 [shape = 'u32[144,128]{1,0:T(1,128)}', space=vmem, size = 0x12000, scoped, tag = 'internal scratch']
  %s0 = inlined_call_operand.vmem [shape: f32[8,128], index: 0, kind: input, shape index: {}]
  %s1 = inlined_call_operand.vmem [shape: f32[3,8,128], index: 1, kind: input, shape index: {}]
  %s2 = inlined_call_operand.vmem [shape: f32[3,64,1], index: 2, kind: input, shape index: {}]
  %s3 = inlined_call_operand.vmem [shape: f32[64,8], index: 3, kind: input, shape index: {}]
  %s4 = inlined_call_operand.vmem [shape: bf16[8,64], index: 4, kind: input, shape index: {}]
  %s5 = inlined_call_operand.vmem [shape: bf16[3,128,128], index: 5, kind: input, shape index: {}]
  %s6 = inlined_call_operand.vmem [shape: f32[3,1,128], index: 6, kind: input, shape index: {}]
  %s7 = inlined_call_operand.vmem [shape: bf16[3,128,128], index: 7, kind: input, shape index: {}]
  %s8 = inlined_call_operand.vmem [shape: f32[3,1,128], index: 8, kind: input, shape index: {}]
  %s9 = inlined_call_operand.vmem [shape: bf16[3,8,128], index: 9, kind: input, shape index: {}]
  %s10 = inlined_call_operand.vmem [shape: bf16[3,128,256], index: 10, kind: input, shape index: {}]
  %s11 = inlined_call_operand.vmem [shape: bf16[3,256,256], index: 11, kind: input, shape index: {}]
  %s12 = inlined_call_operand.vmem [shape: bf16[3,128,128], index: 12, kind: input, shape index: {}]
  %s13 = inlined_call_operand.hbm [shape: f32[8,128], index: 13, kind: output, shape index: {0}]
  %s14 = inlined_call_operand.hbm [shape: f32[3,8,128], index: 14, kind: output, shape index: {1}]
  %15 = xla_tuple %s13, %s14
  %s16 = sld [smem:[#allocation0]]
  $region97: #{newtonnet_forward.1} parent=0
    _
  %s18 = ssub.s32 1, %s16
  %s19 = scalar_select 0, %s18, %s16
  $region1: #{newtonnet_forward.1} parent=0
    #allocation2 [shape = 'u8[4096]{0}', space=vmem, size = 0x1000, scoped, tag = 'output window, operand 0, single buffered']
    #allocation3 [shape = 's32[2]{0}', space=sflag, size = 0x8, scoped, tag = 'scoped memory for newtonnet_forward.1']
    #allocation4 [shape = 'u8[12288]{0}', space=vmem, size = 0x3000, scoped, tag = 'output window, operand 1, single buffered']
    #allocation5 [shape = 's32[1]{0}', space=sflag, size = 0x4, scoped, tag = 'scoped memory for newtonnet_forward.1']
    %20 = vsyncpa [#allocation3], 0
    %21 = vsyncpa [#allocation5], 0
    loop: start=0, step=1, limit=5
    $region2: #{newtonnet_forward.1} parent=1 // loop_pre_header
      _
    $region3: #{newtonnet_forward.1} parent=1 // loop_header
      %s23 = sphi 0, %s27
      %p24 = scmp.ge.s32.totalorder %s23, 5
      %s31 = sphi 0, %s31
      %s33 = sphi 0, %s31
      %s34 = sphi 0, %s33
      %s48 = sphi 0, %s34
      %s52 = sphi 0, %s52
      %s54 = sphi 0, %s52
      %s55 = sphi 0, %s54
      %s69 = sphi 0, %s55
      %s73 = sphi 0, %s73
      %s75 = sphi 0, %s73
      %s76 = sphi 0, %s75
      %s90 = sphi 0, %s76
      %s94 = sphi 0, %s94
      %s96 = sphi 0, %s94
      %s97 = sphi 0, %s96
      %s111 = sphi 0, %s97
      %s115 = sphi 0, %s115
      %s117 = sphi 0, %s115
      %s118 = sphi 0, %s117
      %s132 = sphi 0, %s118
      %s138 = sphi 0, %s140
      %s141 = sphi 0, %s138
      %s142 = sphi 0, %s141
      %s158 = sphi 0, %s142
      %s164 = sphi 0, %s166
      %s167 = sphi 0, %s164
      %s168 = sphi 0, %s167
      %s184 = sphi 0, %s168
      %s190 = sphi 0, %s192
      %s193 = sphi 0, %s190
      %s194 = sphi 0, %s193
      %s210 = sphi 0, %s194
      %s216 = sphi 0, %s218
      %s219 = sphi 0, %s216
      %s220 = sphi 0, %s219
      %s236 = sphi 0, %s220
      %s242 = sphi 0, %s244
      %s245 = sphi 0, %s242
      %s246 = sphi 0, %s245
      %s262 = sphi 0, %s246
      %s268 = sphi 0, %s270
      %s271 = sphi 0, %s268
      %s272 = sphi 0, %s271
      %s288 = sphi 0, %s272
      %s294 = sphi 0, %s296
      %s297 = sphi 0, %s294
      %s298 = sphi 0, %s297
      %s314 = sphi 0, %s298
      %s320 = sphi 0, %s322
      %s323 = sphi 0, %s320
      %s324 = sphi 0, %s323
      %s340 = sphi 0, %s324
      %s344 = sphi 0, %s344
      %s346 = sphi 0, %s344
      %s347 = sphi 0, %s346
      %s361 = sphi 0, %s347
      %s365 = sphi 0, %s365
      %s367 = sphi 0, %s365
      %s368 = sphi 0, %s367
      %s382 = sphi 0, %s368
    $region4: #{newtonnet_forward.1} parent=1 // loop_header_branch
      %26 = sbr.rel (%p24) target = $region8
    $region5: #{newtonnet_forward.1} parent=1 // loop_body
      %s28 = ssub.s32 %s23, 1
      %s29 = ssub.s32 %s23, 2
      %s30 = sadd.s32 %s23, 1
      %s32 = sadd.s32 %s31, 1
      %p35 = scmp.eq.s32.totalorder %s23, 2
      %p36 = scmp.ne.s32.totalorder %s31, %s33
      %p37 = scmp.eq.s32.totalorder %s23, 0
      %p38 = por %p36, %p37
      %p39 = scmp.ne.s32.totalorder %s31, %s33
      %p40 = scmp.eq.s32.totalorder %s28, 2
      %p41 = por %p39, %p40
      %p42 = scmp.ne.s32.totalorder %s33, %s34
      %p43 = scmp.eq.s32.totalorder %s28, 0
      %p44 = por %p42, %p43
      %p45 = scmp.ne.s32.totalorder %s33, %s34
      %p46 = scmp.eq.s32.totalorder %s29, 2
      %p47 = por %p45, %p46
      %p49 = scmp.ne.s32.totalorder %s34, %s48
      %p50 = scmp.eq.s32.totalorder %s29, 0
      %p51 = por %p49, %p50
      %s53 = sadd.s32 %s52, 1
      %p56 = scmp.eq.s32.totalorder %s23, 2
      %p57 = scmp.ne.s32.totalorder %s52, %s54
      %p58 = scmp.eq.s32.totalorder %s23, 0
      %p59 = por %p57, %p58
      %p60 = scmp.ne.s32.totalorder %s52, %s54
      %p61 = scmp.eq.s32.totalorder %s28, 2
      %p62 = por %p60, %p61
      %p63 = scmp.ne.s32.totalorder %s54, %s55
      %p64 = scmp.eq.s32.totalorder %s28, 0
      %p65 = por %p63, %p64
      %p66 = scmp.ne.s32.totalorder %s54, %s55
      %p67 = scmp.eq.s32.totalorder %s29, 2
      %p68 = por %p66, %p67
      %p70 = scmp.ne.s32.totalorder %s55, %s69
      %p71 = scmp.eq.s32.totalorder %s29, 0
      %p72 = por %p70, %p71
      %s74 = sadd.s32 %s73, 1
      %p77 = scmp.eq.s32.totalorder %s23, 2
      %p78 = scmp.ne.s32.totalorder %s73, %s75
      %p79 = scmp.eq.s32.totalorder %s23, 0
      %p80 = por %p78, %p79
      %p81 = scmp.ne.s32.totalorder %s73, %s75
      %p82 = scmp.eq.s32.totalorder %s28, 2
      %p83 = por %p81, %p82
      %p84 = scmp.ne.s32.totalorder %s75, %s76
      %p85 = scmp.eq.s32.totalorder %s28, 0
      %p86 = por %p84, %p85
      %p87 = scmp.ne.s32.totalorder %s75, %s76
      %p88 = scmp.eq.s32.totalorder %s29, 2
      %p89 = por %p87, %p88
      %p91 = scmp.ne.s32.totalorder %s76, %s90
      %p92 = scmp.eq.s32.totalorder %s29, 0
      %p93 = por %p91, %p92
      %s95 = sadd.s32 %s94, 1
      %p98 = scmp.eq.s32.totalorder %s23, 2
      %p99 = scmp.ne.s32.totalorder %s94, %s96
      %p100 = scmp.eq.s32.totalorder %s23, 0
      %p101 = por %p99, %p100
      %p102 = scmp.ne.s32.totalorder %s94, %s96
      %p103 = scmp.eq.s32.totalorder %s28, 2
      %p104 = por %p102, %p103
      %p105 = scmp.ne.s32.totalorder %s96, %s97
      %p106 = scmp.eq.s32.totalorder %s28, 0
      %p107 = por %p105, %p106
      %p108 = scmp.ne.s32.totalorder %s96, %s97
      %p109 = scmp.eq.s32.totalorder %s29, 2
      %p110 = por %p108, %p109
      %p112 = scmp.ne.s32.totalorder %s97, %s111
      %p113 = scmp.eq.s32.totalorder %s29, 0
      %p114 = por %p112, %p113
      %s116 = sadd.s32 %s115, 1
      %p119 = scmp.eq.s32.totalorder %s23, 2
      %p120 = scmp.ne.s32.totalorder %s115, %s117
      %p121 = scmp.eq.s32.totalorder %s23, 0
      %p122 = por %p120, %p121
      %p123 = scmp.ne.s32.totalorder %s115, %s117
      %p124 = scmp.eq.s32.totalorder %s28, 2
      %p125 = por %p123, %p124
      %p126 = scmp.ne.s32.totalorder %s117, %s118
      %p127 = scmp.eq.s32.totalorder %s28, 0
      %p128 = por %p126, %p127
      %p129 = scmp.ne.s32.totalorder %s117, %s118
      %p130 = scmp.eq.s32.totalorder %s29, 2
      %p131 = por %p129, %p130
      %p133 = scmp.ne.s32.totalorder %s118, %s132
      %p134 = scmp.eq.s32.totalorder %s29, 0
      %p135 = por %p133, %p134
      %s136 = ssub.s32 %s23, %s30
      %p137 = scmp.eq.s32.totalorder %s136, 0
      %s139 = sadd.s32 %s138, 1
      %s140 = scalar_select %p137, %s138, %s139
      %p143 = pneg %p137
      %p144 = scmp.eq.s32.totalorder %s23, 2
      %p145 = por %p143, %p144
      %p146 = scmp.ne.s32.totalorder %s138, %s141
      %p147 = scmp.eq.s32.totalorder %s23, 0
      %p148 = por %p146, %p147
      %p149 = scmp.ne.s32.totalorder %s138, %s141
      %p150 = scmp.eq.s32.totalorder %s28, 2
      %p151 = por %p149, %p150
      %p152 = scmp.ne.s32.totalorder %s141, %s142
      %p153 = scmp.eq.s32.totalorder %s28, 0
      %p154 = por %p152, %p153
      %p155 = scmp.ne.s32.totalorder %s141, %s142
      %p156 = scmp.eq.s32.totalorder %s29, 2
      %p157 = por %p155, %p156
      %p159 = scmp.ne.s32.totalorder %s142, %s158
      %p160 = scmp.eq.s32.totalorder %s29, 0
      %p161 = por %p159, %p160
      %s162 = ssub.s32 %s23, %s30
      %p163 = scmp.eq.s32.totalorder %s162, 0
      %s165 = sadd.s32 %s164, 1
      %s166 = scalar_select %p163, %s164, %s165
      %p169 = pneg %p163
      %p170 = scmp.eq.s32.totalorder %s23, 2
      %p171 = por %p169, %p170
      %p172 = scmp.ne.s32.totalorder %s164, %s167
      %p173 = scmp.eq.s32.totalorder %s23, 0
      %p174 = por %p172, %p173
      %p175 = scmp.ne.s32.totalorder %s164, %s167
      %p176 = scmp.eq.s32.totalorder %s28, 2
      %p177 = por %p175, %p176
      %p178 = scmp.ne.s32.totalorder %s167, %s168
      %p179 = scmp.eq.s32.totalorder %s28, 0
      %p180 = por %p178, %p179
      %p181 = scmp.ne.s32.totalorder %s167, %s168
      %p182 = scmp.eq.s32.totalorder %s29, 2
      %p183 = por %p181, %p182
      %p185 = scmp.ne.s32.totalorder %s168, %s184
      %p186 = scmp.eq.s32.totalorder %s29, 0
      %p187 = por %p185, %p186
      %s188 = ssub.s32 %s23, %s30
      %p189 = scmp.eq.s32.totalorder %s188, 0
      %s191 = sadd.s32 %s190, 1
      %s192 = scalar_select %p189, %s190, %s191
      %p195 = pneg %p189
      %p196 = scmp.eq.s32.totalorder %s23, 2
      %p197 = por %p195, %p196
      %p198 = scmp.ne.s32.totalorder %s190, %s193
      %p199 = scmp.eq.s32.totalorder %s23, 0
      %p200 = por %p198, %p199
      %p201 = scmp.ne.s32.totalorder %s190, %s193
      %p202 = scmp.eq.s32.totalorder %s28, 2
      %p203 = por %p201, %p202
      %p204 = scmp.ne.s32.totalorder %s193, %s194
      %p205 = scmp.eq.s32.totalorder %s28, 0
      %p206 = por %p204, %p205
      %p207 = scmp.ne.s32.totalorder %s193, %s194
      %p208 = scmp.eq.s32.totalorder %s29, 2
      %p209 = por %p207, %p208
      %p211 = scmp.ne.s32.totalorder %s194, %s210
      %p212 = scmp.eq.s32.totalorder %s29, 0
      %p213 = por %p211, %p212
      %s214 = ssub.s32 %s23, %s30
      %p215 = scmp.eq.s32.totalorder %s214, 0
      %s217 = sadd.s32 %s216, 1
      %s218 = scalar_select %p215, %s216, %s217
      %p221 = pneg %p215
      %p222 = scmp.eq.s32.totalorder %s23, 2
      %p223 = por %p221, %p222
      %p224 = scmp.ne.s32.totalorder %s216, %s219
      %p225 = scmp.eq.s32.totalorder %s23, 0
      %p226 = por %p224, %p225
      %p227 = scmp.ne.s32.totalorder %s216, %s219
      %p228 = scmp.eq.s32.totalorder %s28, 2
      %p229 = por %p227, %p228
      %p230 = scmp.ne.s32.totalorder %s219, %s220
      %p231 = scmp.eq.s32.totalorder %s28, 0
      %p232 = por %p230, %p231
      %p233 = scmp.ne.s32.totalorder %s219, %s220
      %p234 = scmp.eq.s32.totalorder %s29, 2
      %p235 = por %p233, %p234
      %p237 = scmp.ne.s32.totalorder %s220, %s236
      %p238 = scmp.eq.s32.totalorder %s29, 0
      %p239 = por %p237, %p238
      %s240 = ssub.s32 %s23, %s30
      %p241 = scmp.eq.s32.totalorder %s240, 0
      %s243 = sadd.s32 %s242, 1
      %s244 = scalar_select %p241, %s242, %s243
      %p247 = pneg %p241
      %p248 = scmp.eq.s32.totalorder %s23, 2
      %p249 = por %p247, %p248
      %p250 = scmp.ne.s32.totalorder %s242, %s245
      %p251 = scmp.eq.s32.totalorder %s23, 0
      %p252 = por %p250, %p251
      %p253 = scmp.ne.s32.totalorder %s242, %s245
      %p254 = scmp.eq.s32.totalorder %s28, 2
      %p255 = por %p253, %p254
      %p256 = scmp.ne.s32.totalorder %s245, %s246
      %p257 = scmp.eq.s32.totalorder %s28, 0
      %p258 = por %p256, %p257
      %p259 = scmp.ne.s32.totalorder %s245, %s246
      %p260 = scmp.eq.s32.totalorder %s29, 2
      %p261 = por %p259, %p260
      %p263 = scmp.ne.s32.totalorder %s246, %s262
      %p264 = scmp.eq.s32.totalorder %s29, 0
      %p265 = por %p263, %p264
      %s266 = ssub.s32 %s23, %s30
      %p267 = scmp.eq.s32.totalorder %s266, 0
      %s269 = sadd.s32 %s268, 1
      %s270 = scalar_select %p267, %s268, %s269
      %p273 = pneg %p267
      %p274 = scmp.eq.s32.totalorder %s23, 2
      %p275 = por %p273, %p274
      %p276 = scmp.ne.s32.totalorder %s268, %s271
      %p277 = scmp.eq.s32.totalorder %s23, 0
      %p278 = por %p276, %p277
      %p279 = scmp.ne.s32.totalorder %s268, %s271
      %p280 = scmp.eq.s32.totalorder %s28, 2
      %p281 = por %p279, %p280
      %p282 = scmp.ne.s32.totalorder %s271, %s272
      %p283 = scmp.eq.s32.totalorder %s28, 0
      %p284 = por %p282, %p283
      %p285 = scmp.ne.s32.totalorder %s271, %s272
      %p286 = scmp.eq.s32.totalorder %s29, 2
      %p287 = por %p285, %p286
      %p289 = scmp.ne.s32.totalorder %s272, %s288
      %p290 = scmp.eq.s32.totalorder %s29, 0
      %p291 = por %p289, %p290
      %s292 = ssub.s32 %s23, %s30
      %p293 = scmp.eq.s32.totalorder %s292, 0
      %s295 = sadd.s32 %s294, 1
      %s296 = scalar_select %p293, %s294, %s295
      %p299 = pneg %p293
      %p300 = scmp.eq.s32.totalorder %s23, 2
      %p301 = por %p299, %p300
      %p302 = scmp.ne.s32.totalorder %s294, %s297
      %p303 = scmp.eq.s32.totalorder %s23, 0
      %p304 = por %p302, %p303
      %p305 = scmp.ne.s32.totalorder %s294, %s297
      %p306 = scmp.eq.s32.totalorder %s28, 2
      %p307 = por %p305, %p306
      %p308 = scmp.ne.s32.totalorder %s297, %s298
      %p309 = scmp.eq.s32.totalorder %s28, 0
      %p310 = por %p308, %p309
      %p311 = scmp.ne.s32.totalorder %s297, %s298
      %p312 = scmp.eq.s32.totalorder %s29, 2
      %p313 = por %p311, %p312
      %p315 = scmp.ne.s32.totalorder %s298, %s314
      %p316 = scmp.eq.s32.totalorder %s29, 0
      %p317 = por %p315, %p316
      %s318 = ssub.s32 %s23, %s30
      %p319 = scmp.eq.s32.totalorder %s318, 0
      %s321 = sadd.s32 %s320, 1
      %s322 = scalar_select %p319, %s320, %s321
      %p325 = pneg %p319
      %p326 = scmp.eq.s32.totalorder %s23, 2
      %p327 = por %p325, %p326
      %p328 = scmp.ne.s32.totalorder %s320, %s323
      %p329 = scmp.eq.s32.totalorder %s23, 0
      %p330 = por %p328, %p329
      %p331 = scmp.ne.s32.totalorder %s320, %s323
      %p332 = scmp.eq.s32.totalorder %s28, 2
      %p333 = por %p331, %p332
      %p334 = scmp.ne.s32.totalorder %s323, %s324
      %p335 = scmp.eq.s32.totalorder %s28, 0
      %p336 = por %p334, %p335
      %p337 = scmp.ne.s32.totalorder %s323, %s324
      %p338 = scmp.eq.s32.totalorder %s29, 2
      %p339 = por %p337, %p338
      %p341 = scmp.ne.s32.totalorder %s324, %s340
      %p342 = scmp.eq.s32.totalorder %s29, 0
      %p343 = por %p341, %p342
      %s345 = sadd.s32 %s344, 1
      %p348 = scmp.eq.s32.totalorder %s23, 2
      %p349 = scmp.ne.s32.totalorder %s344, %s346
      %p350 = scmp.eq.s32.totalorder %s23, 0
      %p351 = por %p349, %p350
      %p352 = scmp.ne.s32.totalorder %s344, %s346
      %p353 = scmp.eq.s32.totalorder %s28, 2
      %p354 = por %p352, %p353
      %p355 = scmp.ne.s32.totalorder %s346, %s347
      %p356 = scmp.eq.s32.totalorder %s28, 0
      %p357 = por %p355, %p356
      %p358 = scmp.ne.s32.totalorder %s346, %s347
      %p359 = scmp.eq.s32.totalorder %s29, 2
      %p360 = por %p358, %p359
      %p362 = scmp.ne.s32.totalorder %s347, %s361
      %p363 = scmp.eq.s32.totalorder %s29, 0
      %p364 = por %p362, %p363
      %s366 = sadd.s32 %s365, 1
      %p369 = scmp.eq.s32.totalorder %s23, 2
      %p370 = scmp.ne.s32.totalorder %s365, %s367
      %p371 = scmp.eq.s32.totalorder %s23, 0
      %p372 = por %p370, %p371
      %p373 = scmp.ne.s32.totalorder %s365, %s367
      %p374 = scmp.eq.s32.totalorder %s28, 2
      %p375 = por %p373, %p374
      %p376 = scmp.ne.s32.totalorder %s367, %s368
      %p377 = scmp.eq.s32.totalorder %s28, 0
      %p378 = por %p376, %p377
      %p379 = scmp.ne.s32.totalorder %s367, %s368
      %p380 = scmp.eq.s32.totalorder %s29, 2
      %p381 = por %p379, %p380
      %p383 = scmp.ne.s32.totalorder %s368, %s382
      %p384 = scmp.eq.s32.totalorder %s29, 0
      %p385 = por %p383, %p384
      %p386 = scmp.le.s32.totalorder 1, %s23
      %p387 = scmp.lt.s32.totalorder %s23, 4
      %p388 = pnand %p386, %p387
      %p389 = pneg %p388
      // Predicated region
      $region9: #{newtonnet_forward.1} parent=5 // pred_check
        _
      $region10: #{newtonnet_forward.1} parent=5 // pred_check_branch
        %391 = sbr.rel (%p388) target = $region12
      $region11: #{newtonnet_forward.1} parent=5 // pred_region
        %s392 = ssub.s32 %s23, 1
        // Predicated region
        $region13: #{newtonnet_forward.1} parent=11 // pred_check
          %p393 = pneg %p44
        $region14: #{newtonnet_forward.1} parent=11 // pred_check_branch
          %395 = sbr.rel (%p393) target = $region16
        $region15: #{newtonnet_forward.1} parent=11 // pred_region
          _
        $region16: #{newtonnet_forward.1} parent=11 // pred_fallthru
          _
        // Predicated region
        $region17: #{newtonnet_forward.1} parent=11 // pred_check
          %p396 = pneg %p65
        $region18: #{newtonnet_forward.1} parent=11 // pred_check_branch
          %398 = sbr.rel (%p396) target = $region20
        $region19: #{newtonnet_forward.1} parent=11 // pred_region
          _
        $region20: #{newtonnet_forward.1} parent=11 // pred_fallthru
          _
        // Predicated region
        $region21: #{newtonnet_forward.1} parent=11 // pred_check
          %p399 = pneg %p86
        $region22: #{newtonnet_forward.1} parent=11 // pred_check_branch
          %401 = sbr.rel (%p399) target = $region24
        $region23: #{newtonnet_forward.1} parent=11 // pred_region
          _
        $region24: #{newtonnet_forward.1} parent=11 // pred_fallthru
          _
        // Predicated region
        $region25: #{newtonnet_forward.1} parent=11 // pred_check
          %p402 = pneg %p107
        $region26: #{newtonnet_forward.1} parent=11 // pred_check_branch
          %404 = sbr.rel (%p402) target = $region28
        $region27: #{newtonnet_forward.1} parent=11 // pred_region
          _
        $region28: #{newtonnet_forward.1} parent=11 // pred_fallthru
          _
        // Predicated region
        $region29: #{newtonnet_forward.1} parent=11 // pred_check
          %p405 = pneg %p128
        $region30: #{newtonnet_forward.1} parent=11 // pred_check_branch
          %407 = sbr.rel (%p405) target = $region32
        $region31: #{newtonnet_forward.1} parent=11 // pred_region
          _
        $region32: #{newtonnet_forward.1} parent=11 // pred_fallthru
          _
      $region12: #{newtonnet_forward.1} parent=5 // pred_fallthru
        _
      %p408 = scmp.lt.s32.totalorder %s23, 3
      // Predicated region
      $region33: #{newtonnet_forward.1} parent=5 // pred_check
        %p409 = pneg %p408
      $region34: #{newtonnet_forward.1} parent=5 // pred_check_branch
        %411 = sbr.rel (%p409) target = $region36
      $region35: #{newtonnet_forward.1} parent=5 // pred_region
        // Predicated region
        $region37: #{newtonnet_forward.1} parent=35 // pred_check
          %p412 = pneg %p148
        $region38: #{newtonnet_forward.1} parent=35 // pred_check_branch
          %414 = sbr.rel (%p412) target = $region40
        $region39: #{newtonnet_forward.1} parent=35 // pred_region
          %p415 = scmp.lt.s32.totalorder %s23, 2
          %s416 = scalar_select %p415, %s23, 2
          %s417 = smul.addr %s416, 16
          %s418 = smul.addr %s417, 4
          %s419 = scalar_lea.vmem %s5, %s418
        $region40: #{newtonnet_forward.1} parent=35 // pred_fallthru
          _
        // Predicated region
        $region41: #{newtonnet_forward.1} parent=35 // pred_check
          %p420 = pneg %p174
        $region42: #{newtonnet_forward.1} parent=35 // pred_check_branch
          %422 = sbr.rel (%p420) target = $region44
        $region43: #{newtonnet_forward.1} parent=35 // pred_region
          %p423 = scmp.lt.s32.totalorder %s23, 2
          %s424 = scalar_select %p423, %s23, 2
          %s425 = scalar_lea.vmem %s6, %s424
        $region44: #{newtonnet_forward.1} parent=35 // pred_fallthru
          _
        // Predicated region
        $region45: #{newtonnet_forward.1} parent=35 // pred_check
          %p426 = pneg %p200
        $region46: #{newtonnet_forward.1} parent=35 // pred_check_branch
          %428 = sbr.rel (%p426) target = $region48
        $region47: #{newtonnet_forward.1} parent=35 // pred_region
          %p429 = scmp.lt.s32.totalorder %s23, 2
          %s430 = scalar_select %p429, %s23, 2
          %s431 = smul.addr %s430, 16
          %s432 = smul.addr %s431, 4
          %s433 = scalar_lea.vmem %s7, %s432
        $region48: #{newtonnet_forward.1} parent=35 // pred_fallthru
          _
        // Predicated region
        $region49: #{newtonnet_forward.1} parent=35 // pred_check
          %p434 = pneg %p226
        $region50: #{newtonnet_forward.1} parent=35 // pred_check_branch
          %436 = sbr.rel (%p434) target = $region52
        $region51: #{newtonnet_forward.1} parent=35 // pred_region
          %p437 = scmp.lt.s32.totalorder %s23, 2
          %s438 = scalar_select %p437, %s23, 2
          %s439 = scalar_lea.vmem %s8, %s438
        $region52: #{newtonnet_forward.1} parent=35 // pred_fallthru
          _
        // Predicated region
        $region53: #{newtonnet_forward.1} parent=35 // pred_check
          %p440 = pneg %p252
        $region54: #{newtonnet_forward.1} parent=35 // pred_check_branch
          %442 = sbr.rel (%p440) target = $region56
        $region55: #{newtonnet_forward.1} parent=35 // pred_region
          %p443 = scmp.lt.s32.totalorder %s23, 2
          %s444 = scalar_select %p443, %s23, 2
          %s445 = smul.addr %s444, 4
          %s446 = scalar_lea.vmem %s9, %s445
        $region56: #{newtonnet_forward.1} parent=35 // pred_fallthru
          _
        // Predicated region
        $region57: #{newtonnet_forward.1} parent=35 // pred_check
          %p447 = pneg %p278
        $region58: #{newtonnet_forward.1} parent=35 // pred_check_branch
          %449 = sbr.rel (%p447) target = $region60
        $region59: #{newtonnet_forward.1} parent=35 // pred_region
          %p450 = scmp.lt.s32.totalorder %s23, 2
          %s451 = scalar_select %p450, %s23, 2
          %s452 = smul.addr %s451, 32
          %s453 = smul.addr %s452, 4
          %s454 = scalar_lea.vmem %s10, %s453
        $region60: #{newtonnet_forward.1} parent=35 // pred_fallthru
          _
        // Predicated region
        $region61: #{newtonnet_forward.1} parent=35 // pred_check
          %p455 = pneg %p304
        $region62: #{newtonnet_forward.1} parent=35 // pred_check_branch
          %457 = sbr.rel (%p455) target = $region64
        $region63: #{newtonnet_forward.1} parent=35 // pred_region
          %p458 = scmp.lt.s32.totalorder %s23, 2
          %s459 = scalar_select %p458, %s23, 2
          %s460 = smul.addr %s459, 64
          %s461 = smul.addr %s460, 4
          %s462 = scalar_lea.vmem %s11, %s461
        $region64: #{newtonnet_forward.1} parent=35 // pred_fallthru
          _
        // Predicated region
        $region65: #{newtonnet_forward.1} parent=35 // pred_check
          %p463 = pneg %p330
        $region66: #{newtonnet_forward.1} parent=35 // pred_check_branch
          %465 = sbr.rel (%p463) target = $region68
        $region67: #{newtonnet_forward.1} parent=35 // pred_region
          %p466 = scmp.lt.s32.totalorder %s23, 2
          %s467 = scalar_select %p466, %s23, 2
          %s468 = smul.addr %s467, 16
          %s469 = smul.addr %s468, 4
          %s470 = scalar_lea.vmem %s12, %s469
        $region68: #{newtonnet_forward.1} parent=35 // pred_fallthru
          _
      $region36: #{newtonnet_forward.1} parent=5 // pred_fallthru
        _
      %p471 = scmp.le.s32.totalorder 1, %s23
      %p472 = scmp.lt.s32.totalorder %s23, 4
      %p473 = pnand %p471, %p472
      %p474 = pneg %p473
      // Predicated region
      $region69: #{newtonnet_forward.1} parent=5 // pred_check
        _
      $region70: #{newtonnet_forward.1} parent=5 // pred_check_branch
        %476 = sbr.rel (%p473) target = $region72
      $region71: #{newtonnet_forward.1} parent=5 // pred_region
        %s477 = ssub.s32 %s23, 1
        %p478 = pneg %p44
        %p479 = pneg %p41
        %p480 = pneg %p65
        %p481 = pneg %p62
        %p482 = pneg %p86
        %p483 = pneg %p83
        %p484 = pneg %p107
        %p485 = pneg %p104
        %p486 = pneg %p128
        %p487 = pneg %p125
        %p488 = scmp.lt.s32.totalorder %s28, 2
        %s489 = scalar_select %p488, %s28, 2
        %s490 = smul.addr %s489, 16
        %s491 = smul.addr %s490, 4
        %s492 = scalar_lea.vmem %s5, %s491
        %p493 = pneg %p154
        %p494 = pneg %p151
        %p495 = scmp.lt.s32.totalorder %s28, 2
        %s496 = scalar_select %p495, %s28, 2
        %s497 = scalar_lea.vmem %s6, %s496
        %p498 = pneg %p180
        %p499 = pneg %p177
        %p500 = scmp.lt.s32.totalorder %s28, 2
        %s501 = scalar_select %p500, %s28, 2
        %s502 = smul.addr %s501, 16
        %s503 = smul.addr %s502, 4
        %s504 = scalar_lea.vmem %s7, %s503
        %p505 = pneg %p206
        %p506 = pneg %p203
        %p507 = scmp.lt.s32.totalorder %s28, 2
        %s508 = scalar_select %p507, %s28, 2
        %s509 = scalar_lea.vmem %s8, %s508
        %p510 = pneg %p232
        %p511 = pneg %p229
        %p512 = scmp.lt.s32.totalorder %s28, 2
        %s513 = scalar_select %p512, %s28, 2
        %s514 = smul.addr %s513, 4
        %s515 = scalar_lea.vmem %s9, %s514
        %p516 = pneg %p258
        %p517 = pneg %p255
        %p518 = scmp.lt.s32.totalorder %s28, 2
        %s519 = scalar_select %p518, %s28, 2
        %s520 = smul.addr %s519, 32
        %s521 = smul.addr %s520, 4
        %s522 = scalar_lea.vmem %s10, %s521
        %p523 = pneg %p284
        %p524 = pneg %p281
        %p525 = scmp.lt.s32.totalorder %s28, 2
        %s526 = scalar_select %p525, %s28, 2
        %s527 = smul.addr %s526, 64
        %s528 = smul.addr %s527, 4
        %s529 = scalar_lea.vmem %s11, %s528
        %p530 = pneg %p310
        %p531 = pneg %p307
        %p532 = scmp.lt.s32.totalorder %s28, 2
        %s533 = scalar_select %p532, %s28, 2
        %s534 = smul.addr %s533, 16
        %s535 = smul.addr %s534, 4
        %s536 = scalar_lea.vmem %s12, %s535
        %p537 = pneg %p336
        %p538 = pneg %p333
        %p539 = pneg %p357
        %p540 = pneg %p354
        %p541 = pneg %p378
        %p542 = pneg %p375
        %p543 = scmp.lt.s32.totalorder %s28, 2
        %s544 = scalar_select %p543, %s28, 2
        %s545 = smul.addr %s544, 16
        %s546 = smul.addr %s545, 4
        %s547 = scalar_lea.vmem %s5, %s546
        %p548 = scmp.lt.s32.totalorder %s28, 2
        %s549 = scalar_select %p548, %s28, 2
        %s550 = scalar_lea.vmem %s6, %s549
        %p551 = scmp.lt.s32.totalorder %s28, 2
        %s552 = scalar_select %p551, %s28, 2
        %s553 = smul.addr %s552, 16
        %s554 = smul.addr %s553, 4
        %s555 = scalar_lea.vmem %s7, %s554
        %p556 = scmp.lt.s32.totalorder %s28, 2
        %s557 = scalar_select %p556, %s28, 2
        %s558 = scalar_lea.vmem %s8, %s557
        %p559 = scmp.lt.s32.totalorder %s28, 2
        %s560 = scalar_select %p559, %s28, 2
        %s561 = smul.addr %s560, 4
        %s562 = scalar_lea.vmem %s9, %s561
        %p563 = scmp.lt.s32.totalorder %s28, 2
        %s564 = scalar_select %p563, %s28, 2
        %s565 = smul.addr %s564, 32
        %s566 = smul.addr %s565, 4
        %s567 = scalar_lea.vmem %s10, %s566
        %p568 = scmp.lt.s32.totalorder %s28, 2
        %s569 = scalar_select %p568, %s28, 2
        %s570 = smul.addr %s569, 64
        %s571 = smul.addr %s570, 4
        %s572 = scalar_lea.vmem %s11, %s571
        %p573 = scmp.lt.s32.totalorder %s28, 2
        %s574 = scalar_select %p573, %s28, 2
        %s575 = smul.addr %s574, 16
        %s576 = smul.addr %s575, 4
        %s577 = scalar_lea.vmem %s12, %s576
        %p579 = scmp.eq.s32.totalorder %s28, 0
        // Predicated region
        $region73: #{newtonnet_forward.1} parent=71 // pred_check
          %p580 = pneg %p579
        $region74: #{newtonnet_forward.1} parent=71 // pred_check_branch
          %582 = sbr.rel (%p580) target = $region76
        $region75: #{newtonnet_forward.1} parent=71 // pred_region
          %v583 = vld [vmem:[%s0] sm:$0xff]
          %584 = vst [vmem:[#allocation2] sm:$0xff] %v583
          %v585 = vld [vmem:[%s1] sm:$0xff]
          %v586 = vld [vmem:[%s1 + $0x8] sm:$0xff]
          %v587 = vld [vmem:[%s1 + $0x10] sm:$0xff]
          %588 = vst [vmem:[#allocation4] sm:$0xff] %v585
          %589 = vst [vmem:[#allocation4 + $0x8] sm:$0xff] %v586
          %590 = vst [vmem:[#allocation4 + $0x10] sm:$0xff] %v587
        $region76: #{newtonnet_forward.1} parent=71 // pred_fallthru
          _
        %v591 = vld [vmem:[#allocation2] sm:$0xff]
        %v592 = vld [vmem:[%s547] sm:$0xf]
        %v593 = vld [vmem:[%s547 + $0x4] sm:$0xf]
        %v594 = vld [vmem:[%s547 + $0x8] sm:$0xf]
        %v595 = vld [vmem:[%s547 + $0xc] sm:$0xf]
        %v596 = vld [vmem:[%s547 + $0x10] sm:$0xf]
        %v597 = vld [vmem:[%s547 + $0x14] sm:$0xf]
        %v598 = vld [vmem:[%s547 + $0x18] sm:$0xf]
        %v599 = vld [vmem:[%s547 + $0x1c] sm:$0xf]
        %v600 = vld [vmem:[%s547 + $0x20] sm:$0xf]
        %v601 = vld [vmem:[%s547 + $0x24] sm:$0xf]
        %v602 = vld [vmem:[%s547 + $0x28] sm:$0xf]
        %v603 = vld [vmem:[%s547 + $0x2c] sm:$0xf]
        %v604 = vld [vmem:[%s547 + $0x30] sm:$0xf]
        %v605 = vld [vmem:[%s547 + $0x34] sm:$0xf]
        %v606 = vld [vmem:[%s547 + $0x38] sm:$0xf]
        %v607 = vld [vmem:[%s547 + $0x3c] sm:$0xf]
        %v608 = vpack.c.bf16 %v591, %v591
        %v609 = vld [vmem:[%s550] sm:$0x1]
        %v611 = vlaneseq
        %v612 = vshrl.u32 %v611, 7
        %v613 = vsub.s32 0, %v612
        %v614 = vrot.slane %v609, %v613
        %v632 = vunpack.c.l.b16 %v592
        %v633 = vunpack.c.l.b16 %v593
        %v634 = vunpack.c.l.b16 %v594
        %v635 = vunpack.c.l.b16 %v595
        %v636 = vunpack.c.l.b16 %v596
        %v637 = vunpack.c.l.b16 %v597
        %v638 = vunpack.c.l.b16 %v598
        %v639 = vunpack.c.l.b16 %v599
        %v640 = vunpack.c.l.b16 %v600
        %v641 = vunpack.c.l.b16 %v601
        %v642 = vunpack.c.l.b16 %v602
        %v643 = vunpack.c.l.b16 %v603
        %v644 = vunpack.c.l.b16 %v604
        %v645 = vunpack.c.l.b16 %v605
        %v646 = vunpack.c.l.b16 %v606
        %v647 = vunpack.c.l.b16 %v607
        %v648 = vpack.c.b16 %v633, %v632
        %v649 = vpack.c.b16 %v635, %v634
        %v650 = vpack.c.b16 %v637, %v636
        %v651 = vpack.c.b16 %v639, %v638
        %v652 = vpack.c.b16 %v641, %v640
        %v653 = vpack.c.b16 %v643, %v642
        %v654 = vpack.c.b16 %v645, %v644
        %v655 = vpack.c.b16 %v647, %v646
        %664 = vmatprep.subr.bf16.mxu0 0
        %665 = vmatpush1.bf16.msra.mxu0 %v648
        %666 = vmatprep.subr.bf16.mxu0 0
        %667 = vmatpush1.bf16.msra.mxu0 %v649
        %668 = vmatprep.subr.bf16.mxu0 0
        %669 = vmatpush1.bf16.msra.mxu0 %v650
        %670 = vmatprep.subr.bf16.mxu0 0
        %671 = vmatpush1.bf16.msra.mxu0 %v651
        %672 = vmatprep.subr.bf16.mxu0 0
        %673 = vmatpush1.bf16.msra.mxu0 %v652
        %674 = vmatprep.subr.bf16.mxu0 0
        %675 = vmatpush1.bf16.msra.mxu0 %v653
        %676 = vmatprep.subr.bf16.mxu0 0
        %677 = vmatpush1.bf16.msra.mxu0 %v654
        %678 = vmatprep.subr.bf16.mxu0 0
        %679 = vmatpush1.bf16.msra.mxu0 %v655
        %680 = vmatprep.subr.bf16.mxu0 0
        %681 = vmatpush1.bf16.msra.mxu0 0
        %682 = vmatprep.subr.bf16.mxu0 0
        %683 = vmatpush1.bf16.msra.mxu0 0
        %684 = vmatprep.subr.bf16.mxu0 0
        %685 = vmatpush1.bf16.msra.mxu0 0
        %686 = vmatprep.subr.bf16.mxu0 0
        %687 = vmatpush1.bf16.msra.mxu0 0
        %688 = vmatprep.subr.bf16.mxu0 0
        %689 = vmatpush1.bf16.msra.mxu0 0
        %690 = vmatprep.subr.bf16.mxu0 0
        %691 = vmatpush1.bf16.msra.mxu0 0
        %692 = vmatprep.subr.bf16.mxu0 0
        %693 = vmatpush1.bf16.msra.mxu0 0
        %694 = vmatprep.subr.bf16.mxu0 0
        %695 = vmatpush1.bf16.msra.mxu0 0
        %696 = vmatprep.mubr.bf16.mxu0 0
        %697 = vmatmul.mubr.bf16.gmra.mrb[0].mxu0 %v608
        %v698 = vpop.f32.mrb[0].mxu0
        %v699 = vadd.f32 %v614, %v698
        %v700 = vpop.f32.mrb[0].mxu0
        %v701 = vpop.f32.mrb[0].mxu0
        %v702 = vpop.f32.mrb[0].mxu0
        %703 = vdwg.mxu0
        %v704 = vsub.f32 0.0, %v699
        %v705 = vmul.f32 %v704, 1.442695
        %v706 = vpow.pop %v705
        %v707 = vadd.f32 %v706, 1.0
        %v708 = vrcp.pop %v707
        %v709 = vmul.f32 %v699, %v708
        %v710 = vld [vmem:[%s555] sm:$0xf]
        %v711 = vld [vmem:[%s555 + $0x4] sm:$0xf]
        %v712 = vld [vmem:[%s555 + $0x8] sm:$0xf]
        %v713 = vld [vmem:[%s555 + $0xc] sm:$0xf]
        %v714 = vld [vmem:[%s555 + $0x10] sm:$0xf]
        %v715 = vld [vmem:[%s555 + $0x14] sm:$0xf]
        %v716 = vld [vmem:[%s555 + $0x18] sm:$0xf]
        %v717 = vld [vmem:[%s555 + $0x1c] sm:$0xf]
        %v718 = vld [vmem:[%s555 + $0x20] sm:$0xf]
        %v719 = vld [vmem:[%s555 + $0x24] sm:$0xf]
        %v720 = vld [vmem:[%s555 + $0x28] sm:$0xf]
        %v721 = vld [vmem:[%s555 + $0x2c] sm:$0xf]
        %v722 = vld [vmem:[%s555 + $0x30] sm:$0xf]
        %v723 = vld [vmem:[%s555 + $0x34] sm:$0xf]
        %v724 = vld [vmem:[%s555 + $0x38] sm:$0xf]
        %v725 = vld [vmem:[%s555 + $0x3c] sm:$0xf]
        %v726 = vpack.c.bf16 %v709, %v709
        %v727 = vld [vmem:[%s558] sm:$0x1]
        %v729 = vlaneseq
        %v730 = vshrl.u32 %v729, 7
        %v731 = vsub.s32 0, %v730
        %v732 = vrot.slane %v727, %v731
        %v750 = vunpack.c.l.b16 %v710
        %v751 = vunpack.c.l.b16 %v711
        %v752 = vunpack.c.l.b16 %v712
        %v753 = vunpack.c.l.b16 %v713
        %v754 = vunpack.c.l.b16 %v714
        %v755 = vunpack.c.l.b16 %v715
        %v756 = vunpack.c.l.b16 %v716
        %v757 = vunpack.c.l.b16 %v717
        %v758 = vunpack.c.l.b16 %v718
        %v759 = vunpack.c.l.b16 %v719
        %v760 = vunpack.c.l.b16 %v720
        %v761 = vunpack.c.l.b16 %v721
        %v762 = vunpack.c.l.b16 %v722
        %v763 = vunpack.c.l.b16 %v723
        %v764 = vunpack.c.l.b16 %v724
        %v765 = vunpack.c.l.b16 %v725
        %v766 = vpack.c.b16 %v751, %v750
        %v767 = vpack.c.b16 %v753, %v752
        %v768 = vpack.c.b16 %v755, %v754
        %v769 = vpack.c.b16 %v757, %v756
        %v770 = vpack.c.b16 %v759, %v758
        %v771 = vpack.c.b16 %v761, %v760
        %v772 = vpack.c.b16 %v763, %v762
        %v773 = vpack.c.b16 %v765, %v764
        %782 = vmatprep.subr.bf16.mxu0 0
        %783 = vmatpush1.bf16.msra.mxu0 %v766
        %784 = vmatprep.subr.bf16.mxu0 0
        %785 = vmatpush1.bf16.msra.mxu0 %v767
        %786 = vmatprep.subr.bf16.mxu0 0
        %787 = vmatpush1.bf16.msra.mxu0 %v768
        %788 = vmatprep.subr.bf16.mxu0 0
        %789 = vmatpush1.bf16.msra.mxu0 %v769
        %790 = vmatprep.subr.bf16.mxu0 0
        %791 = vmatpush1.bf16.msra.mxu0 %v770
        %792 = vmatprep.subr.bf16.mxu0 0
        %793 = vmatpush1.bf16.msra.mxu0 %v771
        %794 = vmatprep.subr.bf16.mxu0 0
        %795 = vmatpush1.bf16.msra.mxu0 %v772
        %796 = vmatprep.subr.bf16.mxu0 0
        %797 = vmatpush1.bf16.msra.mxu0 %v773
        %798 = vmatprep.subr.bf16.mxu0 0
        %799 = vmatpush1.bf16.msra.mxu0 0
        %800 = vmatprep.subr.bf16.mxu0 0
        %801 = vmatpush1.bf16.msra.mxu0 0
        %802 = vmatprep.subr.bf16.mxu0 0
        %803 = vmatpush1.bf16.msra.mxu0 0
        %804 = vmatprep.subr.bf16.mxu0 0
        %805 = vmatpush1.bf16.msra.mxu0 0
        %806 = vmatprep.subr.bf16.mxu0 0
        %807 = vmatpush1.bf16.msra.mxu0 0
        %808 = vmatprep.subr.bf16.mxu0 0
        %809 = vmatpush1.bf16.msra.mxu0 0
        %810 = vmatprep.subr.bf16.mxu0 0
        %811 = vmatpush1.bf16.msra.mxu0 0
        %812 = vmatprep.subr.bf16.mxu0 0
        %813 = vmatpush1.bf16.msra.mxu0 0
        %814 = vmatprep.mubr.bf16.mxu0 0
        %815 = vmatmul.mubr.bf16.gmra.mrb[0].mxu0 %v726
        %v816 = vpop.f32.mrb[0].mxu0
        %v817 = vadd.f32 %v732, %v816
        %v818 = vpop.f32.mrb[0].mxu0
        %v819 = vpop.f32.mrb[0].mxu0
        %v820 = vpop.f32.mrb[0].mxu0
        %821 = vdwg.mxu0
        %v822 = vld [vmem:[%s3] sm:$0xff]
        %v823 = vld [vmem:[%s3 + $0x8] sm:$0xff]
        %v824 = vld [vmem:[%s3 + $0x10] sm:$0xff]
        %v825 = vld [vmem:[%s3 + $0x18] sm:$0xff]
        %v826 = vld [vmem:[%s3 + $0x20] sm:$0xff]
        %v827 = vld [vmem:[%s3 + $0x28] sm:$0xff]
        %v828 = vld [vmem:[%s3 + $0x30] sm:$0xff]
        %v829 = vld [vmem:[%s3 + $0x38] sm:$0xff]
        %v830 = vld [vmem:[%s562] sm:$0xf]
        %v831 = vpack.c.bf16 %v823, %v822
        %v832 = vpack.c.bf16 %v825, %v824
        %v833 = vpack.c.bf16 %v827, %v826
        %v834 = vpack.c.bf16 %v829, %v828
        %vm835 = vcmask 64512
        %v837 = vsel %vm835, %v831, 0
        %v840 = vsel %vm835, %v832, 0
        %v843 = vsel %vm835, %v833, 0
        %v846 = vsel %vm835, %v834, 0
        %vm848 = vcmask 1043456
        %v850 = vsel %vm848, %v830, 0
        %852 = vmatprep.subr.bf16.mxu0 0
        %853 = vmatpush1.bf16.msra.mxu0 %v850
        %854 = vmatprep.subr.bf16.mxu0 0
        %855 = vmatpush1.bf16.msra.mxu0 0
        %856 = vmatprep.subr.bf16.mxu0 0
        %857 = vmatpush1.bf16.msra.mxu0 0
        %858 = vmatprep.subr.bf16.mxu0 0
        %859 = vmatpush1.bf16.msra.mxu0 0
        %860 = vmatprep.subr.bf16.mxu0 0
        %861 = vmatpush1.bf16.msra.mxu0 0
        %862 = vmatprep.subr.bf16.mxu0 0
        %863 = vmatpush1.bf16.msra.mxu0 0
        %864 = vmatprep.subr.bf16.mxu0 0
        %865 = vmatpush1.bf16.msra.mxu0 0
        %866 = vmatprep.subr.bf16.mxu0 0
        %867 = vmatpush1.bf16.msra.mxu0 0
        %868 = vmatprep.subr.bf16.mxu0 0
        %869 = vmatpush1.bf16.msra.mxu0 0
        %870 = vmatprep.subr.bf16.mxu0 0
        %871 = vmatpush1.bf16.msra.mxu0 0
        %872 = vmatprep.subr.bf16.mxu0 0
        %873 = vmatpush1.bf16.msra.mxu0 0
        %874 = vmatprep.subr.bf16.mxu0 0
        %875 = vmatpush1.bf16.msra.mxu0 0
        %876 = vmatprep.subr.bf16.mxu0 0
        %877 = vmatpush1.bf16.msra.mxu0 0
        %878 = vmatprep.subr.bf16.mxu0 0
        %879 = vmatpush1.bf16.msra.mxu0 0
        %880 = vmatprep.subr.bf16.mxu0 0
        %881 = vmatpush1.bf16.msra.mxu0 0
        %882 = vmatprep.subr.bf16.mxu0 0
        %883 = vmatpush1.bf16.msra.mxu0 0
        %884 = vmatprep.mubr.bf16.mxu0 0
        %885 = vmatmul.mubr.bf16.gmra.mrb[0].mxu0 %v837
        %v886 = vpop.f32.mrb[0].mxu0
        %v887 = vadd.f32 0.0, %v886
        %v888 = vpop.f32.mrb[0].mxu0
        %v889 = vpop.f32.mrb[0].mxu0
        %v890 = vadd.f32 0.0, %v889
        %v891 = vpop.f32.mrb[0].mxu0
        %892 = vmatprep.mubr.bf16.mxu0 0
        %893 = vmatmul.mubr.bf16.gmra.mrb[0].mxu0 %v840
        %v894 = vpop.f32.mrb[0].mxu0
        %v895 = vadd.f32 0.0, %v894
        %v896 = vpop.f32.mrb[0].mxu0
        %v897 = vpop.f32.mrb[0].mxu0
        %v898 = vadd.f32 0.0, %v897
        %v899 = vpop.f32.mrb[0].mxu0
        %900 = vmatprep.mubr.bf16.mxu0 0
        %901 = vmatmul.mubr.bf16.gmra.mrb[0].mxu0 %v843
        %v902 = vpop.f32.mrb[0].mxu0
        %v903 = vadd.f32 0.0, %v902
        %v904 = vpop.f32.mrb[0].mxu0
        %v905 = vpop.f32.mrb[0].mxu0
        %v906 = vadd.f32 0.0, %v905
        %v907 = vpop.f32.mrb[0].mxu0
        %908 = vmatprep.mubr.bf16.mxu0 0
        %909 = vmatmul.mubr.bf16.gmra.mrb[0].mxu0 %v846
        %v910 = vpop.f32.mrb[0].mxu0
        %v911 = vadd.f32 0.0, %v910
        %v912 = vpop.f32.mrb[0].mxu0
        %v913 = vpop.f32.mrb[0].mxu0
        %v914 = vadd.f32 0.0, %v913
        %v915 = vpop.f32.mrb[0].mxu0
        %916 = vdwg.mxu0
        %v918 = vcombine.high %v817, %v817
        %v920 = vunpack.c.l.s4 1966171168
        %v921 = vunpack.c.0.s8 %v920
        %v922 = vlaneseq
        %v923 = vshrl.u32 %v922, 7
        %v924 = vsub.s32 %v921, %v923
        %v925 = vrot.slane %v817, %v924
        %v927 = vunpack.c.l.s4 1966171168
        %v928 = vunpack.c.0.s8 %v927
        %v929 = vlaneseq
        %v930 = vshrl.u32 %v929, 7
        %v931 = vsub.s32 %v928, %v930
        %v932 = vrot.slane %v918, %v931
        %v933 = vcombine.high %v925, %v925
        %v934 = vcombine.high %v932, %v932
        %v936 = vunpack.c.l.s4 1966171168
        %v937 = vunpack.c.0.s8 %v936
        %v938 = vlaneseq
        %v939 = vshrl.u32 %v938, 7
        %v940 = vsub.s32 %v937, %v939
        %v941 = vrot.slane %v925, %v940
        %v943 = vunpack.c.l.s4 1966171168
        %v944 = vunpack.c.0.s8 %v943
        %v945 = vlaneseq
        %v946 = vshrl.u32 %v945, 7
        %v947 = vsub.s32 %v944, %v946
        %v948 = vrot.slane %v932, %v947
        %v950 = vunpack.c.l.s4 1966171168
        %v951 = vunpack.c.0.s8 %v950
        %v952 = vlaneseq
        %v953 = vshrl.u32 %v952, 7
        %v954 = vsub.s32 %v951, %v953
        %v955 = vrot.slane %v933, %v954
        %v957 = vunpack.c.l.s4 1966171168
        %v958 = vunpack.c.0.s8 %v957
        %v959 = vlaneseq
        %v960 = vshrl.u32 %v959, 7
        %v961 = vsub.s32 %v958, %v960
        %v962 = vrot.slane %v934, %v961
        %v963 = vcombine.high %v941, %v941
        %v964 = vcombine.high %v948, %v948
        %v965 = vcombine.high %v955, %v955
        %v966 = vcombine.high %v962, %v962
        %v967 = vlaneseq
        %v968 = vshrl.u32 %v967, 7
        %v969 = vsub.s32 0, %v968
        %v970 = vrot.slane %v941, %v969
        %v971 = vlaneseq
        %v972 = vshrl.u32 %v971, 7
        %v973 = vsub.s32 0, %v972
        %v974 = vrot.slane %v955, %v973
        %v975 = vlaneseq
        %v976 = vshrl.u32 %v975, 7
        %v977 = vsub.s32 0, %v976
        %v978 = vrot.slane %v963, %v977
        %v979 = vlaneseq
        %v980 = vshrl.u32 %v979, 7
        %v981 = vsub.s32 0, %v980
        %v982 = vrot.slane %v965, %v981
        %v983 = vlaneseq
        %v984 = vshrl.u32 %v983, 7
        %v985 = vsub.s32 0, %v984
        %v986 = vrot.slane %v948, %v985
        %v987 = vlaneseq
        %v988 = vshrl.u32 %v987, 7
        %v989 = vsub.s32 0, %v988
        %v990 = vrot.slane %v962, %v989
        %v991 = vlaneseq
        %v992 = vshrl.u32 %v991, 7
        %v993 = vsub.s32 0, %v992
        %v994 = vrot.slane %v964, %v993
        %v995 = vlaneseq
        %v996 = vshrl.u32 %v995, 7
        %v997 = vsub.s32 0, %v996
        %v998 = vrot.slane %v966, %v997
        %v1007 = vmul.f32 %v887, %v970
        %v1008 = vmul.f32 %v890, %v974
        %v1009 = vmul.f32 %v895, %v978
        %v1010 = vmul.f32 %v898, %v982
        %v1011 = vmul.f32 %v903, %v986
        %v1012 = vmul.f32 %v906, %v990
        %v1013 = vmul.f32 %v911, %v994
        %v1014 = vmul.f32 %v914, %v998
        %v1015 = vmul.f32 %v1007, %v817
        %v1016 = vmul.f32 %v1008, %v817
        %v1017 = vmul.f32 %v1009, %v817
        %v1018 = vmul.f32 %v1010, %v817
        %v1019 = vmul.f32 %v1011, %v817
        %v1020 = vmul.f32 %v1012, %v817
        %v1021 = vmul.f32 %v1013, %v817
        %v1022 = vmul.f32 %v1014, %v817
        %v1023 = vld [vmem:[%s4] sm:$0xf]
        %v1024 = vpack.c.bf16 %v1016, %v1015
        %v1025 = vpack.c.bf16 %v1018, %v1017
        %v1026 = vpack.c.bf16 %v1020, %v1019
        %v1027 = vpack.c.bf16 %v1022, %v1021
        %vm1028 = vcmask 523264
        %v1030 = vsel %vm1028, %v1023, 0
        %1032 = vmatprep.subr.bf16.mxu0 0
        %1033 = vmatpush1.bf16.msra.mxu0 %v1024
        %1034 = vmatprep.subr.bf16.mxu0 0
        %1035 = vmatpush1.bf16.msra.mxu0 %v1025
        %1036 = vmatprep.subr.bf16.mxu0 0
        %1037 = vmatpush1.bf16.msra.mxu0 %v1026
        %1038 = vmatprep.subr.bf16.mxu0 0
        %1039 = vmatpush1.bf16.msra.mxu0 %v1027
        %1040 = vmatprep.subr.bf16.mxu0 0
        %1041 = vmatpush1.bf16.msra.mxu0 0
        %1042 = vmatprep.subr.bf16.mxu0 0
        %1043 = vmatpush1.bf16.msra.mxu0 0
        %1044 = vmatprep.subr.bf16.mxu0 0
        %1045 = vmatpush1.bf16.msra.mxu0 0
        %1046 = vmatprep.subr.bf16.mxu0 0
        %1047 = vmatpush1.bf16.msra.mxu0 0
        %1048 = vmatprep.subr.bf16.mxu0 0
        %1049 = vmatpush1.bf16.msra.mxu0 0
        %1050 = vmatprep.subr.bf16.mxu0 0
        %1051 = vmatpush1.bf16.msra.mxu0 0
        %1052 = vmatprep.subr.bf16.mxu0 0
        %1053 = vmatpush1.bf16.msra.mxu0 0
        %1054 = vmatprep.subr.bf16.mxu0 0
        %1055 = vmatpush1.bf16.msra.mxu0 0
        %1056 = vmatprep.subr.bf16.mxu0 0
        %1057 = vmatpush1.bf16.msra.mxu0 0
        %1058 = vmatprep.subr.bf16.mxu0 0
        %1059 = vmatpush1.bf16.msra.mxu0 0
        %1060 = vmatprep.subr.bf16.mxu0 0
        %1061 = vmatpush1.bf16.msra.mxu0 0
        %1062 = vmatprep.subr.bf16.mxu0 0
        %1063 = vmatpush1.bf16.msra.mxu0 0
        %1064 = vmatprep.mubr.bf16.mxu0 0
        %1065 = vmatmul.mubr.bf16.gmra.mrb[0].mxu0 %v1030
        %v1066 = vpop.f32.mrb[0].mxu0
        %v1067 = vadd.f32 0.0, %v1066
        %v1068 = vpop.f32.mrb[0].mxu0
        %v1069 = vpop.f32.mrb[0].mxu0
        %v1070 = vpop.f32.mrb[0].mxu0
        %1071 = vdwg.mxu0
        %v1072 = vadd.f32 %v591, %v1067
        %v1073 = vld [vmem:[%s567] sm:$0xff]
        %v1074 = vld [vmem:[%s567 + $0x8] sm:$0xff]
        %v1075 = vld [vmem:[%s567 + $0x10] sm:$0xff]
        %v1076 = vld [vmem:[%s567 + $0x18] sm:$0xff]
        %v1077 = vld [vmem:[%s567 + $0x20] sm:$0xff]
        %v1078 = vld [vmem:[%s567 + $0x28] sm:$0xff]
        %v1079 = vld [vmem:[%s567 + $0x30] sm:$0xff]
        %v1080 = vld [vmem:[%s567 + $0x38] sm:$0xff]
        %v1081 = vld [vmem:[%s567 + $0x40] sm:$0xff]
        %v1082 = vld [vmem:[%s567 + $0x48] sm:$0xff]
        %v1083 = vld [vmem:[%s567 + $0x50] sm:$0xff]
        %v1084 = vld [vmem:[%s567 + $0x58] sm:$0xff]
        %v1085 = vld [vmem:[%s567 + $0x60] sm:$0xff]
        %v1086 = vld [vmem:[%s567 + $0x68] sm:$0xff]
        %v1087 = vld [vmem:[%s567 + $0x70] sm:$0xff]
        %v1088 = vld [vmem:[%s567 + $0x78] sm:$0xff]
        %v1105 = vunpack.c.l.b16 %v1073
        %v1106 = vunpack.c.h.b16 %v1073
        %v1107 = vunpack.c.l.b16 %v1074
        %v1108 = vunpack.c.h.b16 %v1074
        %v1109 = vunpack.c.l.b16 %v1075
        %v1110 = vunpack.c.h.b16 %v1075
        %v1111 = vunpack.c.l.b16 %v1076
        %v1112 = vunpack.c.h.b16 %v1076
        %v1113 = vunpack.c.l.b16 %v1077
        %v1114 = vunpack.c.h.b16 %v1077
        %v1115 = vunpack.c.l.b16 %v1078
        %v1116 = vunpack.c.h.b16 %v1078
        %v1117 = vunpack.c.l.b16 %v1079
        %v1118 = vunpack.c.h.b16 %v1079
        %v1119 = vunpack.c.l.b16 %v1080
        %v1120 = vunpack.c.h.b16 %v1080
        %v1121 = vunpack.c.l.b16 %v1081
        %v1122 = vunpack.c.h.b16 %v1081
        %v1123 = vunpack.c.l.b16 %v1082
        %v1124 = vunpack.c.h.b16 %v1082
        %v1125 = vunpack.c.l.b16 %v1083
        %v1126 = vunpack.c.h.b16 %v1083
        %v1127 = vunpack.c.l.b16 %v1084
        %v1128 = vunpack.c.h.b16 %v1084
        %v1129 = vunpack.c.l.b16 %v1085
        %v1130 = vunpack.c.h.b16 %v1085
        %v1131 = vunpack.c.l.b16 %v1086
        %v1132 = vunpack.c.h.b16 %v1086
        %v1133 = vunpack.c.l.b16 %v1087
        %v1134 = vunpack.c.h.b16 %v1087
        %v1135 = vunpack.c.l.b16 %v1088
        %v1136 = vunpack.c.h.b16 %v1088
        %v1137 = vpack.c.b16 %v1107, %v1105
        %v1138 = vpack.c.b16 %v1108, %v1106
        %v1139 = vpack.c.b16 %v1111, %v1109
        %v1140 = vpack.c.b16 %v1112, %v1110
        %v1141 = vpack.c.b16 %v1115, %v1113
        %v1142 = vpack.c.b16 %v1116, %v1114
        %v1143 = vpack.c.b16 %v1119, %v1117
        %v1144 = vpack.c.b16 %v1120, %v1118
        %v1145 = vpack.c.b16 %v1123, %v1121
        %v1146 = vpack.c.b16 %v1124, %v1122
        %v1147 = vpack.c.b16 %v1127, %v1125
        %v1148 = vpack.c.b16 %v1128, %v1126
        %v1149 = vpack.c.b16 %v1131, %v1129
        %v1150 = vpack.c.b16 %v1132, %v1130
        %v1151 = vpack.c.b16 %v1135, %v1133
        %v1152 = vpack.c.b16 %v1136, %v1134
        %1169 = vmatprep.subr.bf16.mxu0 %v1138
        %1170 = vmatpush1.bf16.msra.mxu0 %v1137
        %1171 = vmatprep.subr.bf16.mxu0 %v1140
        %1172 = vmatpush1.bf16.msra.mxu0 %v1139
        %1173 = vmatprep.subr.bf16.mxu0 %v1142
        %1174 = vmatpush1.bf16.msra.mxu0 %v1141
        %1175 = vmatprep.subr.bf16.mxu0 %v1144
        %1176 = vmatpush1.bf16.msra.mxu0 %v1143
        %1177 = vmatprep.subr.bf16.mxu0 %v1146
        %1178 = vmatpush1.bf16.msra.mxu0 %v1145
        %1179 = vmatprep.subr.bf16.mxu0 %v1148
        %1180 = vmatpush1.bf16.msra.mxu0 %v1147
        %1181 = vmatprep.subr.bf16.mxu0 %v1150
        %1182 = vmatpush1.bf16.msra.mxu0 %v1149
        %1183 = vmatprep.subr.bf16.mxu0 %v1152
        %1184 = vmatpush1.bf16.msra.mxu0 %v1151
        %1185 = vmatprep.subr.bf16.mxu0 0
        %1186 = vmatpush1.bf16.msra.mxu0 0
        %1187 = vmatprep.subr.bf16.mxu0 0
        %1188 = vmatpush1.bf16.msra.mxu0 0
        %1189 = vmatprep.subr.bf16.mxu0 0
        %1190 = vmatpush1.bf16.msra.mxu0 0
        %1191 = vmatprep.subr.bf16.mxu0 0
        %1192 = vmatpush1.bf16.msra.mxu0 0
        %1193 = vmatprep.subr.bf16.mxu0 0
        %1194 = vmatpush1.bf16.msra.mxu0 0
        %1195 = vmatprep.subr.bf16.mxu0 0
        %1196 = vmatpush1.bf16.msra.mxu0 0
        %1197 = vmatprep.subr.bf16.mxu0 0
        %1198 = vmatpush1.bf16.msra.mxu0 0
        %1199 = vmatprep.subr.bf16.mxu0 0
        %1200 = vmatpush1.bf16.msra.mxu0 0
        %1201 = vmatprep.mubr.bf16.mxu0 0
        %1202 = vmatmul.mubr.bf16.gmra.mrb[0].mxu0 %v1024
        %v1203 = vpop.f32.mrb[0].mxu0
        %v1204 = vadd.f32 0.0, %v1203
        %v1205 = vpop.f32.mrb[0].mxu0
        %v1206 = vadd.f32 0.0, %v1205
        %v1207 = vpop.f32.mrb[0].mxu0
        %v1208 = vadd.f32 0.0, %v1207
        %v1209 = vpop.f32.mrb[0].mxu0
        %v1210 = vadd.f32 0.0, %v1209
        %1211 = vmatprep.mubr.bf16.mxu0 0
        %1212 = vmatmul.mubr.bf16.gmra.mrb[0].mxu0 %v1025
        %v1213 = vpop.f32.mrb[0].mxu0
        %v1214 = vadd.f32 0.0, %v1213
        %v1215 = vpop.f32.mrb[0].mxu0
        %v1216 = vadd.f32 0.0, %v1215
        %v1217 = vpop.f32.mrb[0].mxu0
        %v1218 = vadd.f32 0.0, %v1217
        %v1219 = vpop.f32.mrb[0].mxu0
        %v1220 = vadd.f32 0.0, %v1219
        %1221 = vmatprep.mubr.bf16.mxu0 0
        %1222 = vmatmul.mubr.bf16.gmra.mrb[0].mxu0 %v1026
        %v1223 = vpop.f32.mrb[0].mxu0
        %v1224 = vadd.f32 0.0, %v1223
        %v1225 = vpop.f32.mrb[0].mxu0
        %v1226 = vadd.f32 0.0, %v1225
        %v1227 = vpop.f32.mrb[0].mxu0
        %v1228 = vadd.f32 0.0, %v1227
        %v1229 = vpop.f32.mrb[0].mxu0
        %v1230 = vadd.f32 0.0, %v1229
        %1231 = vmatprep.mubr.bf16.mxu0 0
        %1232 = vmatmul.mubr.bf16.gmra.mrb[0].mxu0 %v1027
        %v1233 = vpop.f32.mrb[0].mxu0
        %v1234 = vadd.f32 0.0, %v1233
        %v1235 = vpop.f32.mrb[0].mxu0
        %v1236 = vadd.f32 0.0, %v1235
        %v1237 = vpop.f32.mrb[0].mxu0
        %v1238 = vadd.f32 0.0, %v1237
        %v1239 = vpop.f32.mrb[0].mxu0
        %v1240 = vadd.f32 0.0, %v1239
        %1241 = vdwg.mxu0
        %v1242 = vsub.f32 0.0, %v1204
        %v1243 = vsub.f32 0.0, %v1206
        %v1244 = vsub.f32 0.0, %v1208
        %v1245 = vsub.f32 0.0, %v1210
        %v1246 = vsub.f32 0.0, %v1214
        %v1247 = vsub.f32 0.0, %v1216
        %v1248 = vsub.f32 0.0, %v1218
        %v1249 = vsub.f32 0.0, %v1220
        %v1250 = vsub.f32 0.0, %v1224
        %v1251 = vsub.f32 0.0, %v1226
        %v1252 = vsub.f32 0.0, %v1228
        %v1253 = vsub.f32 0.0, %v1230
        %v1254 = vsub.f32 0.0, %v1234
        %v1255 = vsub.f32 0.0, %v1236
        %v1256 = vsub.f32 0.0, %v1238
        %v1257 = vsub.f32 0.0, %v1240
        %v1258 = vmul.f32 %v1242, 1.442695
        %v1259 = vpow.pop %v1258
        %v1260 = vmul.f32 %v1243, 1.442695
        %v1261 = vpow.pop %v1260
        %v1262 = vmul.f32 %v1244, 1.442695
        %v1263 = vpow.pop %v1262
        %v1264 = vmul.f32 %v1245, 1.442695
        %v1265 = vpow.pop %v1264
        %v1266 = vmul.f32 %v1246, 1.442695
        %v1267 = vpow.pop %v1266
        %v1268 = vmul.f32 %v1247, 1.442695
        %v1269 = vpow.pop %v1268
        %v1270 = vmul.f32 %v1248, 1.442695
        %v1271 = vpow.pop %v1270
        %v1272 = vmul.f32 %v1249, 1.442695
        %v1273 = vpow.pop %v1272
        %v1274 = vmul.f32 %v1250, 1.442695
        %v1275 = vpow.pop %v1274
        %v1276 = vmul.f32 %v1251, 1.442695
        %v1277 = vpow.pop %v1276
        %v1278 = vmul.f32 %v1252, 1.442695
        %v1279 = vpow.pop %v1278
        %v1280 = vmul.f32 %v1253, 1.442695
        %v1281 = vpow.pop %v1280
        %v1282 = vmul.f32 %v1254, 1.442695
        %v1283 = vpow.pop %v1282
        %v1284 = vmul.f32 %v1255, 1.442695
        %v1285 = vpow.pop %v1284
        %v1286 = vmul.f32 %v1256, 1.442695
        %v1287 = vpow.pop %v1286
        %v1288 = vmul.f32 %v1257, 1.442695
        %v1289 = vpow.pop %v1288
        %v1290 = vadd.f32 %v1259, 1.0
        %v1291 = vadd.f32 %v1261, 1.0
        %v1292 = vadd.f32 %v1263, 1.0
        %v1293 = vadd.f32 %v1265, 1.0
        %v1294 = vadd.f32 %v1267, 1.0
        %v1295 = vadd.f32 %v1269, 1.0
        %v1296 = vadd.f32 %v1271, 1.0
        %v1297 = vadd.f32 %v1273, 1.0
        %v1298 = vadd.f32 %v1275, 1.0
        %v1299 = vadd.f32 %v1277, 1.0
        %v1300 = vadd.f32 %v1279, 1.0
        %v1301 = vadd.f32 %v1281, 1.0
        %v1302 = vadd.f32 %v1283, 1.0
        %v1303 = vadd.f32 %v1285, 1.0
        %v1304 = vadd.f32 %v1287, 1.0
        %v1305 = vadd.f32 %v1289, 1.0
        %v1306 = vrcp.pop %v1290
        %v1307 = vrcp.pop %v1291
        %v1308 = vrcp.pop %v1292
        %v1309 = vrcp.pop %v1293
        %v1310 = vrcp.pop %v1294
        %v1311 = vrcp.pop %v1295
        %v1312 = vrcp.pop %v1296
        %v1313 = vrcp.pop %v1297
        %v1314 = vrcp.pop %v1298
        %v1315 = vrcp.pop %v1299
        %v1316 = vrcp.pop %v1300
        %v1317 = vrcp.pop %v1301
        %v1318 = vrcp.pop %v1302
        %v1319 = vrcp.pop %v1303
        %v1320 = vrcp.pop %v1304
        %v1321 = vrcp.pop %v1305
        %v1322 = vmul.f32 %v1204, %v1306
        %v1323 = vmul.f32 %v1206, %v1307
        %v1324 = vmul.f32 %v1208, %v1308
        %v1325 = vmul.f32 %v1210, %v1309
        %v1326 = vmul.f32 %v1214, %v1310
        %v1327 = vmul.f32 %v1216, %v1311
        %v1328 = vmul.f32 %v1218, %v1312
        %v1329 = vmul.f32 %v1220, %v1313
        %v1330 = vmul.f32 %v1224, %v1314
        %v1331 = vmul.f32 %v1226, %v1315
        %v1332 = vmul.f32 %v1228, %v1316
        %v1333 = vmul.f32 %v1230, %v1317
        %v1334 = vmul.f32 %v1234, %v1318
        %v1335 = vmul.f32 %v1236, %v1319
        %v1336 = vmul.f32 %v1238, %v1320
        %v1337 = vmul.f32 %v1240, %v1321
        %v1338 = vld [vmem:[%s572] sm:$0xff]
        %v1339 = vld [vmem:[%s572 + $0x8] sm:$0xff]
        %v1340 = vld [vmem:[%s572 + $0x10] sm:$0xff]
        %v1341 = vld [vmem:[%s572 + $0x18] sm:$0xff]
        %v1342 = vld [vmem:[%s572 + $0x20] sm:$0xff]
        %v1343 = vld [vmem:[%s572 + $0x28] sm:$0xff]
        %v1344 = vld [vmem:[%s572 + $0x30] sm:$0xff]
        %v1345 = vld [vmem:[%s572 + $0x38] sm:$0xff]
        %v1346 = vld [vmem:[%s572 + $0x40] sm:$0xff]
        %v1347 = vld [vmem:[%s572 + $0x48] sm:$0xff]
        %v1348 = vld [vmem:[%s572 + $0x50] sm:$0xff]
        %v1349 = vld [vmem:[%s572 + $0x58] sm:$0xff]
        %v1350 = vld [vmem:[%s572 + $0x60] sm:$0xff]
        %v1351 = vld [vmem:[%s572 + $0x68] sm:$0xff]
        %v1352 = vld [vmem:[%s572 + $0x70] sm:$0xff]
        %v1353 = vld [vmem:[%s572 + $0x78] sm:$0xff]
        %v1354 = vld [vmem:[%s572 + $0x80] sm:$0xff]
        %v1355 = vld [vmem:[%s572 + $0x88] sm:$0xff]
        %v1356 = vld [vmem:[%s572 + $0x90] sm:$0xff]
        %v1357 = vld [vmem:[%s572 + $0x98] sm:$0xff]
        %v1358 = vld [vmem:[%s572 + $0xa0] sm:$0xff]
        %v1359 = vld [vmem:[%s572 + $0xa8] sm:$0xff]
        %v1360 = vld [vmem:[%s572 + $0xb0] sm:$0xff]
        %v1361 = vld [vmem:[%s572 + $0xb8] sm:$0xff]
        %v1362 = vld [vmem:[%s572 + $0xc0] sm:$0xff]
        %v1363 = vld [vmem:[%s572 + $0xc8] sm:$0xff]
        %v1364 = vld [vmem:[%s572 + $0xd0] sm:$0xff]
        %v1365 = vld [vmem:[%s572 + $0xd8] sm:$0xff]
        %v1366 = vld [vmem:[%s572 + $0xe0] sm:$0xff]
        %v1367 = vld [vmem:[%s572 + $0xe8] sm:$0xff]
        %v1368 = vld [vmem:[%s572 + $0xf0] sm:$0xff]
        %v1369 = vld [vmem:[%s572 + $0xf8] sm:$0xff]
        %v1370 = vpack.c.bf16 %v1324, %v1322
        %v1371 = vpack.c.bf16 %v1325, %v1323
        %v1372 = vpack.c.bf16 %v1328, %v1326
        %v1373 = vpack.c.bf16 %v1329, %v1327
        %v1374 = vpack.c.bf16 %v1332, %v1330
        %v1375 = vpack.c.bf16 %v1333, %v1331
        %v1376 = vpack.c.bf16 %v1336, %v1334
        %v1377 = vpack.c.bf16 %v1337, %v1335
        %v1410 = vunpack.c.l.b16 %v1338
        %v1411 = vunpack.c.h.b16 %v1338
        %v1412 = vunpack.c.l.b16 %v1339
        %v1413 = vunpack.c.h.b16 %v1339
        %v1414 = vunpack.c.l.b16 %v1340
        %v1415 = vunpack.c.h.b16 %v1340
        %v1416 = vunpack.c.l.b16 %v1341
        %v1417 = vunpack.c.h.b16 %v1341
        %v1418 = vunpack.c.l.b16 %v1342
        %v1419 = vunpack.c.h.b16 %v1342
        %v1420 = vunpack.c.l.b16 %v1343
        %v1421 = vunpack.c.h.b16 %v1343
        %v1422 = vunpack.c.l.b16 %v1344
        %v1423 = vunpack.c.h.b16 %v1344
        %v1424 = vunpack.c.l.b16 %v1345
        %v1425 = vunpack.c.h.b16 %v1345
        %v1426 = vunpack.c.l.b16 %v1346
        %v1427 = vunpack.c.h.b16 %v1346
        %v1428 = vunpack.c.l.b16 %v1347
        %v1429 = vunpack.c.h.b16 %v1347
        %v1430 = vunpack.c.l.b16 %v1348
        %v1431 = vunpack.c.h.b16 %v1348
        %v1432 = vunpack.c.l.b16 %v1349
        %v1433 = vunpack.c.h.b16 %v1349
        %v1434 = vunpack.c.l.b16 %v1350
        %v1435 = vunpack.c.h.b16 %v1350
        %v1436 = vunpack.c.l.b16 %v1351
        %v1437 = vunpack.c.h.b16 %v1351
        %v1438 = vunpack.c.l.b16 %v1352
        %v1439 = vunpack.c.h.b16 %v1352
        %v1440 = vunpack.c.l.b16 %v1353
        %v1441 = vunpack.c.h.b16 %v1353
        %v1442 = vunpack.c.l.b16 %v1354
        %v1443 = vunpack.c.h.b16 %v1354
        %v1444 = vunpack.c.l.b16 %v1355
        %v1445 = vunpack.c.h.b16 %v1355
        %v1446 = vunpack.c.l.b16 %v1356
        %v1447 = vunpack.c.h.b16 %v1356
        %v1448 = vunpack.c.l.b16 %v1357
        %v1449 = vunpack.c.h.b16 %v1357
        %v1450 = vunpack.c.l.b16 %v1358
        %v1451 = vunpack.c.h.b16 %v1358
        %v1452 = vunpack.c.l.b16 %v1359
        %v1453 = vunpack.c.h.b16 %v1359
        %v1454 = vunpack.c.l.b16 %v1360
        %v1455 = vunpack.c.h.b16 %v1360
        %v1456 = vunpack.c.l.b16 %v1361
        %v1457 = vunpack.c.h.b16 %v1361
        %v1458 = vunpack.c.l.b16 %v1362
        %v1459 = vunpack.c.h.b16 %v1362
        %v1460 = vunpack.c.l.b16 %v1363
        %v1461 = vunpack.c.h.b16 %v1363
        %v1462 = vunpack.c.l.b16 %v1364
        %v1463 = vunpack.c.h.b16 %v1364
        %v1464 = vunpack.c.l.b16 %v1365
        %v1465 = vunpack.c.h.b16 %v1365
        %v1466 = vunpack.c.l.b16 %v1366
        %v1467 = vunpack.c.h.b16 %v1366
        %v1468 = vunpack.c.l.b16 %v1367
        %v1469 = vunpack.c.h.b16 %v1367
        %v1470 = vunpack.c.l.b16 %v1368
        %v1471 = vunpack.c.h.b16 %v1368
        %v1472 = vunpack.c.l.b16 %v1369
        %v1473 = vunpack.c.h.b16 %v1369
        %v1474 = vpack.c.b16 %v1412, %v1410
        %v1475 = vpack.c.b16 %v1413, %v1411
        %v1476 = vpack.c.b16 %v1416, %v1414
        %v1477 = vpack.c.b16 %v1417, %v1415
        %v1478 = vpack.c.b16 %v1420, %v1418
        %v1479 = vpack.c.b16 %v1421, %v1419
        %v1480 = vpack.c.b16 %v1424, %v1422
        %v1481 = vpack.c.b16 %v1425, %v1423
        %v1482 = vpack.c.b16 %v1428, %v1426
        %v1483 = vpack.c.b16 %v1429, %v1427
        %v1484 = vpack.c.b16 %v1432, %v1430
        %v1485 = vpack.c.b16 %v1433, %v1431
        %v1486 = vpack.c.b16 %v1436, %v1434
        %v1487 = vpack.c.b16 %v1437, %v1435
        %v1488 = vpack.c.b16 %v1440, %v1438
        %v1489 = vpack.c.b16 %v1441, %v1439
        %v1490 = vpack.c.b16 %v1444, %v1442
        %v1491 = vpack.c.b16 %v1445, %v1443
        %v1492 = vpack.c.b16 %v1448, %v1446
        %v1493 = vpack.c.b16 %v1449, %v1447
        %v1494 = vpack.c.b16 %v1452, %v1450
        %v1495 = vpack.c.b16 %v1453, %v1451
        %v1496 = vpack.c.b16 %v1456, %v1454
        %v1497 = vpack.c.b16 %v1457, %v1455
        %v1498 = vpack.c.b16 %v1460, %v1458
        %v1499 = vpack.c.b16 %v1461, %v1459
        %v1500 = vpack.c.b16 %v1464, %v1462
        %v1501 = vpack.c.b16 %v1465, %v1463
        %v1502 = vpack.c.b16 %v1468, %v1466
        %v1503 = vpack.c.b16 %v1469, %v1467
        %v1504 = vpack.c.b16 %v1472, %v1470
        %v1505 = vpack.c.b16 %v1473, %v1471
        %1538 = vmatprep.subr.bf16.mxu0 %v1475
        %1539 = vmatpush1.bf16.msra.mxu0 %v1474
        %1540 = vmatprep.subr.bf16.mxu0 %v1477
        %1541 = vmatpush1.bf16.msra.mxu0 %v1476
        %1542 = vmatprep.subr.bf16.mxu0 %v1479
        %1543 = vmatpush1.bf16.msra.mxu0 %v1478
        %1544 = vmatprep.subr.bf16.mxu0 %v1481
        %1545 = vmatpush1.bf16.msra.mxu0 %v1480
        %1546 = vmatprep.subr.bf16.mxu0 %v1483
        %1547 = vmatpush1.bf16.msra.mxu0 %v1482
        %1548 = vmatprep.subr.bf16.mxu0 %v1485
        %1549 = vmatpush1.bf16.msra.mxu0 %v1484
        %1550 = vmatprep.subr.bf16.mxu0 %v1487
        %1551 = vmatpush1.bf16.msra.mxu0 %v1486
        %1552 = vmatprep.subr.bf16.mxu0 %v1489
        %1553 = vmatpush1.bf16.msra.mxu0 %v1488
        %1554 = vmatprep.subr.bf16.mxu0 %v1491
        %1555 = vmatpush1.bf16.msra.mxu0 %v1490
        %1556 = vmatprep.subr.bf16.mxu0 %v1493
        %1557 = vmatpush1.bf16.msra.mxu0 %v1492
        %1558 = vmatprep.subr.bf16.mxu0 %v1495
        %1559 = vmatpush1.bf16.msra.mxu0 %v1494
        %1560 = vmatprep.subr.bf16.mxu0 %v1497
        %1561 = vmatpush1.bf16.msra.mxu0 %v1496
        %1562 = vmatprep.subr.bf16.mxu0 %v1499
        %1563 = vmatpush1.bf16.msra.mxu0 %v1498
        %1564 = vmatprep.subr.bf16.mxu0 %v1501
        %1565 = vmatpush1.bf16.msra.mxu0 %v1500
        %1566 = vmatprep.subr.bf16.mxu0 %v1503
        %1567 = vmatpush1.bf16.msra.mxu0 %v1502
        %1568 = vmatprep.subr.bf16.mxu0 %v1505
        %1569 = vmatpush1.bf16.msra.mxu0 %v1504
        %1570 = vmatprep.mubr.bf16.mxu0 %v1371
        %1571 = vmatmul.mubr.bf16.gmra.mrb[0].mxu0 %v1370
        %v1572 = vpop.f32.mrb[0].mxu0
        %v1573 = vadd.f32 0.0, %v1572
        %v1574 = vpop.f32.mrb[0].mxu0
        %v1575 = vadd.f32 0.0, %v1574
        %v1576 = vpop.f32.mrb[0].mxu0
        %v1577 = vadd.f32 0.0, %v1576
        %v1578 = vpop.f32.mrb[0].mxu0
        %v1579 = vadd.f32 0.0, %v1578
        %1580 = vmatprep.mubr.bf16.mxu0 %v1373
        %1581 = vmatmul.mubr.bf16.gmra.mrb[0].mxu0 %v1372
        %v1582 = vpop.f32.mrb[0].mxu0
        %v1583 = vadd.f32 0.0, %v1582
        %v1584 = vpop.f32.mrb[0].mxu0
        %v1585 = vadd.f32 0.0, %v1584
        %v1586 = vpop.f32.mrb[0].mxu0
        %v1587 = vadd.f32 0.0, %v1586
        %v1588 = vpop.f32.mrb[0].mxu0
        %v1589 = vadd.f32 0.0, %v1588
        %1590 = vmatprep.mubr.bf16.mxu0 %v1375
        %1591 = vmatmul.mubr.bf16.gmra.mrb[0].mxu0 %v1374
        %v1592 = vpop.f32.mrb[0].mxu0
        %v1593 = vadd.f32 0.0, %v1592
        %v1594 = vpop.f32.mrb[0].mxu0
        %v1595 = vadd.f32 0.0, %v1594
        %v1596 = vpop.f32.mrb[0].mxu0
        %v1597 = vadd.f32 0.0, %v1596
        %v1598 = vpop.f32.mrb[0].mxu0
        %v1599 = vadd.f32 0.0, %v1598
        %1600 = vmatprep.mubr.bf16.mxu0 %v1377
        %1601 = vmatmul.mubr.bf16.gmra.mrb[0].mxu0 %v1376
        %v1602 = vpop.f32.mrb[0].mxu0
        %v1603 = vadd.f32 0.0, %v1602
        %v1604 = vpop.f32.mrb[0].mxu0
        %v1605 = vadd.f32 0.0, %v1604
        %v1606 = vpop.f32.mrb[0].mxu0
        %v1607 = vadd.f32 0.0, %v1606
        %v1608 = vpop.f32.mrb[0].mxu0
        %v1609 = vadd.f32 0.0, %v1608
        %1610 = vdwg.mxu0
        %v1611 = vld [vmem:[#allocation4] sm:$0xff]
        %v1612 = vld [vmem:[#allocation4 + $0x8] sm:$0xff]
        %v1613 = vld [vmem:[#allocation4 + $0x10] sm:$0xff]
        %v1614 = vld [vmem:[%s2] sm:$0xff]
        %v1615 = vld [vmem:[%s2 + $0x8] sm:$0xff]
        %v1616 = vld [vmem:[%s2 + $0x10] sm:$0xff]
        %v1617 = vld [vmem:[%s2 + $0x18] sm:$0xff]
        %v1618 = vld [vmem:[%s2 + $0x20] sm:$0xff]
        %v1619 = vld [vmem:[%s2 + $0x28] sm:$0xff]
        %v1620 = vld [vmem:[%s2 + $0x30] sm:$0xff]
        %v1621 = vld [vmem:[%s2 + $0x38] sm:$0xff]
        %1623 = vset.pattern.permute.xlu0 0
        %1624 = vperm.xlu0 %1623, %v1614
        %v1625 = vpop.permute.xlu0 %1624
        %1628 = vset.pattern.permute.xlu0 0
        %1629 = vperm.xlu0 %1628, %v1615
        %v1630 = vpop.permute.xlu0 %1629
        %1633 = vset.pattern.permute.xlu0 0
        %1634 = vperm.xlu0 %1633, %v1616
        %v1635 = vpop.permute.xlu0 %1634
        %1638 = vset.pattern.permute.xlu0 0
        %1639 = vperm.xlu0 %1638, %v1617
        %v1640 = vpop.permute.xlu0 %1639
        %1643 = vset.pattern.permute.xlu0 0
        %1644 = vperm.xlu0 %1643, %v1618
        %v1645 = vpop.permute.xlu0 %1644
        %1648 = vset.pattern.permute.xlu0 0
        %1649 = vperm.xlu0 %1648, %v1619
        %v1650 = vpop.permute.xlu0 %1649
        %1653 = vset.pattern.permute.xlu0 0
        %1654 = vperm.xlu0 %1653, %v1620
        %v1655 = vpop.permute.xlu0 %1654
        %1658 = vset.pattern.permute.xlu0 0
        %1659 = vperm.xlu0 %1658, %v1621
        %v1660 = vpop.permute.xlu0 %1659
        %v1662 = vmul.f32 %v1573, %v1625
        %v1663 = vmul.f32 %v1577, %v1630
        %v1664 = vmul.f32 %v1583, %v1635
        %v1665 = vmul.f32 %v1587, %v1640
        %v1666 = vmul.f32 %v1593, %v1645
        %v1667 = vmul.f32 %v1597, %v1650
        %v1668 = vmul.f32 %v1603, %v1655
        %v1669 = vmul.f32 %v1607, %v1660
        %v1670 = vmul.f32 %v1575, %v1611
        %v1671 = vmul.f32 %v1579, %v1611
        %v1672 = vmul.f32 %v1585, %v1611
        %v1673 = vmul.f32 %v1589, %v1611
        %v1674 = vmul.f32 %v1595, %v1611
        %v1675 = vmul.f32 %v1599, %v1611
        %v1676 = vmul.f32 %v1605, %v1611
        %v1677 = vmul.f32 %v1609, %v1611
        %v1678 = vadd.f32 %v1662, %v1670
        %v1679 = vadd.f32 %v1663, %v1671
        %v1680 = vadd.f32 %v1664, %v1672
        %v1681 = vadd.f32 %v1665, %v1673
        %v1682 = vadd.f32 %v1666, %v1674
        %v1683 = vadd.f32 %v1667, %v1675
        %v1684 = vadd.f32 %v1668, %v1676
        %v1685 = vadd.f32 %v1669, %v1677
        %s1686 = scalar_lea.vmem %s2, 64
        %v1687 = vld [vmem:[%s1686] sm:$0xff]
        %v1688 = vld [vmem:[%s1686 + $0x8] sm:$0xff]
        %v1689 = vld [vmem:[%s1686 + $0x10] sm:$0xff]
        %v1690 = vld [vmem:[%s1686 + $0x18] sm:$0xff]
        %v1691 = vld [vmem:[%s1686 + $0x20] sm:$0xff]
        %v1692 = vld [vmem:[%s1686 + $0x28] sm:$0xff]
        %v1693 = vld [vmem:[%s1686 + $0x30] sm:$0xff]
        %v1694 = vld [vmem:[%s1686 + $0x38] sm:$0xff]
        %1696 = vset.pattern.permute.xlu0 0
        %1697 = vperm.xlu0 %1696, %v1687
        %v1698 = vpop.permute.xlu0 %1697
        %1701 = vset.pattern.permute.xlu0 0
        %1702 = vperm.xlu0 %1701, %v1688
        %v1703 = vpop.permute.xlu0 %1702
        %1706 = vset.pattern.permute.xlu0 0
        %1707 = vperm.xlu0 %1706, %v1689
        %v1708 = vpop.permute.xlu0 %1707
        %1711 = vset.pattern.permute.xlu0 0
        %1712 = vperm.xlu0 %1711, %v1690
        %v1713 = vpop.permute.xlu0 %1712
        %1716 = vset.pattern.permute.xlu0 0
        %1717 = vperm.xlu0 %1716, %v1691
        %v1718 = vpop.permute.xlu0 %1717
        %1721 = vset.pattern.permute.xlu0 0
        %1722 = vperm.xlu0 %1721, %v1692
        %v1723 = vpop.permute.xlu0 %1722
        %1726 = vset.pattern.permute.xlu0 0
        %1727 = vperm.xlu0 %1726, %v1693
        %v1728 = vpop.permute.xlu0 %1727
        %1731 = vset.pattern.permute.xlu0 0
        %1732 = vperm.xlu0 %1731, %v1694
        %v1733 = vpop.permute.xlu0 %1732
        %v1735 = vmul.f32 %v1573, %v1698
        %v1736 = vmul.f32 %v1577, %v1703
        %v1737 = vmul.f32 %v1583, %v1708
        %v1738 = vmul.f32 %v1587, %v1713
        %v1739 = vmul.f32 %v1593, %v1718
        %v1740 = vmul.f32 %v1597, %v1723
        %v1741 = vmul.f32 %v1603, %v1728
        %v1742 = vmul.f32 %v1607, %v1733
        %v1743 = vmul.f32 %v1575, %v1612
        %v1744 = vmul.f32 %v1579, %v1612
        %v1745 = vmul.f32 %v1585, %v1612
        %v1746 = vmul.f32 %v1589, %v1612
        %v1747 = vmul.f32 %v1595, %v1612
        %v1748 = vmul.f32 %v1599, %v1612
        %v1749 = vmul.f32 %v1605, %v1612
        %v1750 = vmul.f32 %v1609, %v1612
        %v1751 = vadd.f32 %v1735, %v1743
        %v1752 = vadd.f32 %v1736, %v1744
        %v1753 = vadd.f32 %v1737, %v1745
        %v1754 = vadd.f32 %v1738, %v1746
        %v1755 = vadd.f32 %v1739, %v1747
        %v1756 = vadd.f32 %v1740, %v1748
        %v1757 = vadd.f32 %v1741, %v1749
        %v1758 = vadd.f32 %v1742, %v1750
        %s1759 = scalar_lea.vmem %s2, 128
        %v1760 = vld [vmem:[%s1759] sm:$0xff]
        %v1761 = vld [vmem:[%s1759 + $0x8] sm:$0xff]
        %v1762 = vld [vmem:[%s1759 + $0x10] sm:$0xff]
        %v1763 = vld [vmem:[%s1759 + $0x18] sm:$0xff]
        %v1764 = vld [vmem:[%s1759 + $0x20] sm:$0xff]
        %v1765 = vld [vmem:[%s1759 + $0x28] sm:$0xff]
        %v1766 = vld [vmem:[%s1759 + $0x30] sm:$0xff]
        %v1767 = vld [vmem:[%s1759 + $0x38] sm:$0xff]
        %1769 = vset.pattern.permute.xlu0 0
        %1770 = vperm.xlu0 %1769, %v1760
        %v1771 = vpop.permute.xlu0 %1770
        %1774 = vset.pattern.permute.xlu0 0
        %1775 = vperm.xlu0 %1774, %v1761
        %v1776 = vpop.permute.xlu0 %1775
        %1779 = vset.pattern.permute.xlu0 0
        %1780 = vperm.xlu0 %1779, %v1762
        %v1781 = vpop.permute.xlu0 %1780
        %1784 = vset.pattern.permute.xlu0 0
        %1785 = vperm.xlu0 %1784, %v1763
        %v1786 = vpop.permute.xlu0 %1785
        %1789 = vset.pattern.permute.xlu0 0
        %1790 = vperm.xlu0 %1789, %v1764
        %v1791 = vpop.permute.xlu0 %1790
        %1794 = vset.pattern.permute.xlu0 0
        %1795 = vperm.xlu0 %1794, %v1765
        %v1796 = vpop.permute.xlu0 %1795
        %1799 = vset.pattern.permute.xlu0 0
        %1800 = vperm.xlu0 %1799, %v1766
        %v1801 = vpop.permute.xlu0 %1800
        %1804 = vset.pattern.permute.xlu0 0
        %1805 = vperm.xlu0 %1804, %v1767
        %v1806 = vpop.permute.xlu0 %1805
        %v1808 = vmul.f32 %v1573, %v1771
        %v1809 = vmul.f32 %v1577, %v1776
        %v1810 = vmul.f32 %v1583, %v1781
        %v1811 = vmul.f32 %v1587, %v1786
        %v1812 = vmul.f32 %v1593, %v1791
        %v1813 = vmul.f32 %v1597, %v1796
        %v1814 = vmul.f32 %v1603, %v1801
        %v1815 = vmul.f32 %v1607, %v1806
        %v1816 = vmul.f32 %v1575, %v1613
        %v1817 = vmul.f32 %v1579, %v1613
        %v1818 = vmul.f32 %v1585, %v1613
        %v1819 = vmul.f32 %v1589, %v1613
        %v1820 = vmul.f32 %v1595, %v1613
        %v1821 = vmul.f32 %v1599, %v1613
        %v1822 = vmul.f32 %v1605, %v1613
        %v1823 = vmul.f32 %v1609, %v1613
        %v1824 = vadd.f32 %v1808, %v1816
        %v1825 = vadd.f32 %v1809, %v1817
        %v1826 = vadd.f32 %v1810, %v1818
        %v1827 = vadd.f32 %v1811, %v1819
        %v1828 = vadd.f32 %v1812, %v1820
        %v1829 = vadd.f32 %v1813, %v1821
        %v1830 = vadd.f32 %v1814, %v1822
        %v1831 = vadd.f32 %v1815, %v1823
        %v1832 = vpack.c.bf16 %v1679, %v1678
        %v1833 = vpack.c.bf16 %v1752, %v1751
        %v1834 = vpack.c.bf16 %v1825, %v1824
        %v1835 = vpack.c.bf16 %v1681, %v1680
        %v1836 = vpack.c.bf16 %v1754, %v1753
        %v1837 = vpack.c.bf16 %v1827, %v1826
        %v1838 = vpack.c.bf16 %v1683, %v1682
        %v1839 = vpack.c.bf16 %v1756, %v1755
        %v1840 = vpack.c.bf16 %v1829, %v1828
        %v1841 = vpack.c.bf16 %v1685, %v1684
        %v1842 = vpack.c.bf16 %v1758, %v1757
        %v1843 = vpack.c.bf16 %v1831, %v1830
        %1844 = vmatprep.subr.bf16.mxu0 %v1833
        %1845 = vmatpush1.bf16.msra.mxu0 %v1832
        %1846 = vmatprep.subr.bf16.mxu0 %v1836
        %1847 = vmatpush1.bf16.msra.mxu0 %v1835
        %1848 = vmatprep.subr.bf16.mxu0 %v1839
        %1849 = vmatpush1.bf16.msra.mxu0 %v1838
        %1850 = vmatprep.subr.bf16.mxu0 %v1842
        %1851 = vmatpush1.bf16.msra.mxu0 %v1841
        %1852 = vmatprep.subr.bf16.mxu0 0
        %1853 = vmatpush1.bf16.msra.mxu0 0
        %1854 = vmatprep.subr.bf16.mxu0 0
        %1855 = vmatpush1.bf16.msra.mxu0 0
        %1856 = vmatprep.subr.bf16.mxu0 0
        %1857 = vmatpush1.bf16.msra.mxu0 0
        %1858 = vmatprep.subr.bf16.mxu0 0
        %1859 = vmatpush1.bf16.msra.mxu0 0
        %1860 = vmatprep.subr.bf16.mxu0 0
        %1861 = vmatpush1.bf16.msra.mxu0 0
        %1862 = vmatprep.subr.bf16.mxu0 0
        %1863 = vmatpush1.bf16.msra.mxu0 0
        %1864 = vmatprep.subr.bf16.mxu0 0
        %1865 = vmatpush1.bf16.msra.mxu0 0
        %1866 = vmatprep.subr.bf16.mxu0 0
        %1867 = vmatpush1.bf16.msra.mxu0 0
        %1868 = vmatprep.subr.bf16.mxu0 0
        %1869 = vmatpush1.bf16.msra.mxu0 0
        %1870 = vmatprep.subr.bf16.mxu0 0
        %1871 = vmatpush1.bf16.msra.mxu0 0
        %1872 = vmatprep.subr.bf16.mxu0 0
        %1873 = vmatpush1.bf16.msra.mxu0 0
        %1874 = vmatprep.subr.bf16.mxu0 0
        %1875 = vmatpush1.bf16.msra.mxu0 0
        %1876 = vmatprep.mubr.bf16.mxu0 0
        %1877 = vmatmul.mubr.bf16.gmra.mrb[0].mxu0 %v1030
        %v1878 = vpop.f32.mrb[0].mxu0
        %v1879 = vadd.f32 0.0, %v1878
        %v1880 = vpop.f32.mrb[0].mxu0
        %v1881 = vadd.f32 0.0, %v1880
        %v1882 = vpop.f32.mrb[0].mxu0
        %v1883 = vpop.f32.mrb[0].mxu0
        %1884 = vdwg.mxu0
        %1885 = vmatprep.subr.bf16.mxu0 0
        %1886 = vmatpush1.bf16.msra.mxu0 %v1834
        %1887 = vmatprep.subr.bf16.mxu0 0
        %1888 = vmatpush1.bf16.msra.mxu0 %v1837
        %1889 = vmatprep.subr.bf16.mxu0 0
        %1890 = vmatpush1.bf16.msra.mxu0 %v1840
        %1891 = vmatprep.subr.bf16.mxu0 0
        %1892 = vmatpush1.bf16.msra.mxu0 %v1843
        %1893 = vmatprep.subr.bf16.mxu0 0
        %1894 = vmatpush1.bf16.msra.mxu0 0
        %1895 = vmatprep.subr.bf16.mxu0 0
        %1896 = vmatpush1.bf16.msra.mxu0 0
        %1897 = vmatprep.subr.bf16.mxu0 0
        %1898 = vmatpush1.bf16.msra.mxu0 0
        %1899 = vmatprep.subr.bf16.mxu0 0
        %1900 = vmatpush1.bf16.msra.mxu0 0
        %1901 = vmatprep.subr.bf16.mxu0 0
        %1902 = vmatpush1.bf16.msra.mxu0 0
        %1903 = vmatprep.subr.bf16.mxu0 0
        %1904 = vmatpush1.bf16.msra.mxu0 0
        %1905 = vmatprep.subr.bf16.mxu0 0
        %1906 = vmatpush1.bf16.msra.mxu0 0
        %1907 = vmatprep.subr.bf16.mxu0 0
        %1908 = vmatpush1.bf16.msra.mxu0 0
        %1909 = vmatprep.subr.bf16.mxu0 0
        %1910 = vmatpush1.bf16.msra.mxu0 0
        %1911 = vmatprep.subr.bf16.mxu0 0
        %1912 = vmatpush1.bf16.msra.mxu0 0
        %1913 = vmatprep.subr.bf16.mxu0 0
        %1914 = vmatpush1.bf16.msra.mxu0 0
        %1915 = vmatprep.subr.bf16.mxu0 0
        %1916 = vmatpush1.bf16.msra.mxu0 0
        %1917 = vmatprep.mubr.bf16.mxu0 0
        %1918 = vmatmul.mubr.bf16.gmra.mrb[0].mxu0 %v1030
        %v1919 = vpop.f32.mrb[0].mxu0
        %v1920 = vadd.f32 0.0, %v1919
        %v1921 = vpop.f32.mrb[0].mxu0
        %v1922 = vpop.f32.mrb[0].mxu0
        %v1923 = vpop.f32.mrb[0].mxu0
        %1924 = vdwg.mxu0
        %v1925 = vadd.f32 %v1611, %v1879
        %v1926 = vadd.f32 %v1612, %v1881
        %v1927 = vadd.f32 %v1613, %v1920
        %v1928 = vld [vmem:[%s577] sm:$0xf]
        %v1929 = vld [vmem:[%s577 + $0x4] sm:$0xf]
        %v1930 = vld [vmem:[%s577 + $0x8] sm:$0xf]
        %v1931 = vld [vmem:[%s577 + $0xc] sm:$0xf]
        %v1932 = vld [vmem:[%s577 + $0x10] sm:$0xf]
        %v1933 = vld [vmem:[%s577 + $0x14] sm:$0xf]
        %v1934 = vld [vmem:[%s577 + $0x18] sm:$0xf]
        %v1935 = vld [vmem:[%s577 + $0x1c] sm:$0xf]
        %v1936 = vld [vmem:[%s577 + $0x20] sm:$0xf]
        %v1937 = vld [vmem:[%s577 + $0x24] sm:$0xf]
        %v1938 = vld [vmem:[%s577 + $0x28] sm:$0xf]
        %v1939 = vld [vmem:[%s577 + $0x2c] sm:$0xf]
        %v1940 = vld [vmem:[%s577 + $0x30] sm:$0xf]
        %v1941 = vld [vmem:[%s577 + $0x34] sm:$0xf]
        %v1942 = vld [vmem:[%s577 + $0x38] sm:$0xf]
        %v1943 = vld [vmem:[%s577 + $0x3c] sm:$0xf]
        %v1944 = vpack.c.bf16 %v1926, %v1925
        %v1945 = vpack.c.bf16 %v1927, %v1927
        %v1962 = vunpack.c.l.b16 %v1928
        %v1963 = vunpack.c.l.b16 %v1929
        %v1964 = vunpack.c.l.b16 %v1930
        %v1965 = vunpack.c.l.b16 %v1931
        %v1966 = vunpack.c.l.b16 %v1932
        %v1967 = vunpack.c.l.b16 %v1933
        %v1968 = vunpack.c.l.b16 %v1934
        %v1969 = vunpack.c.l.b16 %v1935
        %v1970 = vunpack.c.l.b16 %v1936
        %v1971 = vunpack.c.l.b16 %v1937
        %v1972 = vunpack.c.l.b16 %v1938
        %v1973 = vunpack.c.l.b16 %v1939
        %v1974 = vunpack.c.l.b16 %v1940
        %v1975 = vunpack.c.l.b16 %v1941
        %v1976 = vunpack.c.l.b16 %v1942
        %v1977 = vunpack.c.l.b16 %v1943
        %v1978 = vpack.c.b16 %v1963, %v1962
        %v1979 = vpack.c.b16 %v1965, %v1964
        %v1980 = vpack.c.b16 %v1967, %v1966
        %v1981 = vpack.c.b16 %v1969, %v1968
        %v1982 = vpack.c.b16 %v1971, %v1970
        %v1983 = vpack.c.b16 %v1973, %v1972
        %v1984 = vpack.c.b16 %v1975, %v1974
        %v1985 = vpack.c.b16 %v1977, %v1976
        %1994 = vmatprep.subr.bf16.mxu0 0
        %1995 = vmatpush1.bf16.msra.mxu0 %v1978
        %1996 = vmatprep.subr.bf16.mxu0 0
        %1997 = vmatpush1.bf16.msra.mxu0 %v1979
        %1998 = vmatprep.subr.bf16.mxu0 0
        %1999 = vmatpush1.bf16.msra.mxu0 %v1980
        %2000 = vmatprep.subr.bf16.mxu0 0
        %2001 = vmatpush1.bf16.msra.mxu0 %v1981
        %2002 = vmatprep.subr.bf16.mxu0 0
        %2003 = vmatpush1.bf16.msra.mxu0 %v1982
        %2004 = vmatprep.subr.bf16.mxu0 0
        %2005 = vmatpush1.bf16.msra.mxu0 %v1983
        %2006 = vmatprep.subr.bf16.mxu0 0
        %2007 = vmatpush1.bf16.msra.mxu0 %v1984
        %2008 = vmatprep.subr.bf16.mxu0 0
        %2009 = vmatpush1.bf16.msra.mxu0 %v1985
        %2010 = vmatprep.subr.bf16.mxu0 0
        %2011 = vmatpush1.bf16.msra.mxu0 0
        %2012 = vmatprep.subr.bf16.mxu0 0
        %2013 = vmatpush1.bf16.msra.mxu0 0
        %2014 = vmatprep.subr.bf16.mxu0 0
        %2015 = vmatpush1.bf16.msra.mxu0 0
        %2016 = vmatprep.subr.bf16.mxu0 0
        %2017 = vmatpush1.bf16.msra.mxu0 0
        %2018 = vmatprep.subr.bf16.mxu0 0
        %2019 = vmatpush1.bf16.msra.mxu0 0
        %2020 = vmatprep.subr.bf16.mxu0 0
        %2021 = vmatpush1.bf16.msra.mxu0 0
        %2022 = vmatprep.subr.bf16.mxu0 0
        %2023 = vmatpush1.bf16.msra.mxu0 0
        %2024 = vmatprep.subr.bf16.mxu0 0
        %2025 = vmatpush1.bf16.msra.mxu0 0
        %2026 = vmatprep.mubr.bf16.mxu0 0
        %2027 = vmatmul.mubr.bf16.gmra.mrb[0].mxu0 %v1944
        %v2028 = vpop.f32.mrb[0].mxu0
        %v2029 = vadd.f32 0.0, %v2028
        %v2030 = vpop.f32.mrb[0].mxu0
        %v2031 = vpop.f32.mrb[0].mxu0
        %v2032 = vadd.f32 0.0, %v2031
        %v2033 = vpop.f32.mrb[0].mxu0
        %2034 = vmatprep.mubr.bf16.mxu0 0
        %2035 = vmatmul.mubr.bf16.gmra.mrb[0].mxu0 %v1945
        %v2036 = vpop.f32.mrb[0].mxu0
        %v2037 = vadd.f32 0.0, %v2036
        %v2038 = vpop.f32.mrb[0].mxu0
        %v2039 = vpop.f32.mrb[0].mxu0
        %v2040 = vpop.f32.mrb[0].mxu0
        %2041 = vdwg.mxu0
        %v2042 = vmul.f32 %v1925, %v2029
        %v2043 = vmul.f32 %v1926, %v2032
        %v2044 = vadd.f32 %v2042, %v2043
        %v2045 = vmul.f32 %v1927, %v2037
        %v2046 = vadd.f32 %v2044, %v2045
        %v2047 = vadd.f32 %v1072, %v2046
        %2048 = vst [vmem:[#allocation2] sm:$0xff] %v2047
        %2049 = vst [vmem:[#allocation4] sm:$0xff] %v1925
        %s2050 = scalar_lea.vmem [#allocation4], 8
        %2051 = vst [vmem:[%s2050] sm:$0xff] %v1926
        %s2052 = scalar_lea.vmem [#allocation4], 16
        %2053 = vst [vmem:[%s2052] sm:$0xff] %v1927
        // Predicated region
        $region77: #{newtonnet_forward.1} parent=71 // pred_check
          %p2054 = pneg %p354
        $region78: #{newtonnet_forward.1} parent=71 // pred_check_branch
          %2056 = sbr.rel (%p2054) target = $region80
        $region79: #{newtonnet_forward.1} parent=71 // pred_region
          %s2058 = ssub.s32 128, 128
          %2059 = vsyncadd [#allocation3], %s2058
          %s2061 = sshll.u32 [#allocation2], 4
          %s2062 = int_to_ptr.vmem [resolvable:$true] %s2061
          %2064 = dma.vmem_to_hbm [thread:$0]  %s2062, 128, %s13, [#allocation3]
        $region80: #{newtonnet_forward.1} parent=71 // pred_fallthru
          _
        // Predicated region
        $region81: #{newtonnet_forward.1} parent=71 // pred_check
          %p2065 = pneg %p375
        $region82: #{newtonnet_forward.1} parent=71 // pred_check_branch
          %2067 = sbr.rel (%p2065) target = $region84
        $region83: #{newtonnet_forward.1} parent=71 // pred_region
          %s2069 = ssub.s32 384, 384
          %2070 = vsyncadd [#allocation5], %s2069
          %s2071 = sshll.u32 [#allocation4], 4
          %s2072 = int_to_ptr.vmem [resolvable:$true] %s2071
          %2077 = dma.vmem_to_hbm [thread:$0]  %s2072, 384, %s14, [#allocation5], 128, 128, 8
        $region84: #{newtonnet_forward.1} parent=71 // pred_fallthru
          _
        // Predicated region
        $region85: #{newtonnet_forward.1} parent=71 // pred_check
          %p2078 = pneg %p354
        $region86: #{newtonnet_forward.1} parent=71 // pred_check_branch
          %2080 = sbr.rel (%p2078) target = $region88
        $region87: #{newtonnet_forward.1} parent=71 // pred_region
          %2081 = dma.done [#allocation3], 128
        $region88: #{newtonnet_forward.1} parent=71 // pred_fallthru
          _
        // Predicated region
        $region89: #{newtonnet_forward.1} parent=71 // pred_check
          %p2082 = pneg %p375
        $region90: #{newtonnet_forward.1} parent=71 // pred_check_branch
          %2084 = sbr.rel (%p2082) target = $region92
        $region91: #{newtonnet_forward.1} parent=71 // pred_region
          %2085 = dma.done [#allocation5], 384
        $region92: #{newtonnet_forward.1} parent=71 // pred_fallthru
          _
      $region72: #{newtonnet_forward.1} parent=5 // pred_fallthru
        _
      %p2086 = scmp.le.s32.totalorder 2, %s23
      // Predicated region
      $region93: #{newtonnet_forward.1} parent=5 // pred_check
        %p2087 = pneg %p2086
      $region94: #{newtonnet_forward.1} parent=5 // pred_check_branch
        %2089 = sbr.rel (%p2087) target = $region96
      $region95: #{newtonnet_forward.1} parent=5 // pred_region
        %s2090 = ssub.s32 %s23, 2
      $region96: #{newtonnet_forward.1} parent=5 // pred_fallthru
        _
    $region6: #{newtonnet_forward.1} parent=1 // loop_footer
      %s27 = sadd.s32 1, %s23
    $region7: #{newtonnet_forward.1} parent=1 // loop_footer_branch
      %22 = sbr.rel target = $region3
    $region8: #{newtonnet_forward.1} parent=1 // loop_exit
      _
    %2091 = vsyncpa [#allocation3], 1
    %s2092 = scalar_lea.sflag [#allocation3], 1
    %2093 = vsyncpa %s2092, 1
    %2094 = vsyncpa [#allocation5], 1

</llo_original>
